<compile_context>
chip_gen: v6e
topology: v6e:2x2x1
jax: 0.10.0
libtpu: 0.0.40
codegen_flags: <defaults>
</compile_context>

<pallas_src>
import functools
import math

import jax
import jax.numpy as jnp
from jax.experimental import pallas as pl
from jax.experimental.pallas import tpu as pltpu


def _mha_kernel(q_ref, k_ref, v_ref,
                wq_ref, bq_ref, wk_ref, bk_ref, wv_ref, bv_ref,
                wo_ref, bo_ref, gamma_ref, beta_ref,
                out_ref, *, eps):
    bb, S, D = q_ref.shape            # batch chunk, seq len, d_model
    H = wq_ref.shape[0]               # n_heads
    R = bb * S                        # rows in the folded slab
    scale = 1.0 / math.sqrt(float(S))  # matches torch: np.sqrt(K.size(2)) == seq_len

    # Fold the batch chunk into one row slab: (bb, S, D) -> (bb*S, D).
    q2 = q_ref[...].reshape(R, D)
    k2 = k_ref[...].reshape(R, D)
    v2 = v_ref[...].reshape(R, D)

    # Head-major projections: weights are (H, D, d_k/d_v), biases (H, 1, d_k/d_v).
    # The MXU emits head-major activations directly -> no lane slicing later.
    qb = jnp.broadcast_to(q2, (H, R, D))
    kb = jnp.broadcast_to(k2, (H, R, D))
    vb = jnp.broadcast_to(v2, (H, R, D))
    qh = jnp.einsum("hrd,hde->hre", qb, wq_ref[...],
                    preferred_element_type=jnp.float32) + bq_ref[...]
    kh = jnp.einsum("hrd,hde->hre", kb, wk_ref[...],
                    preferred_element_type=jnp.float32) + bk_ref[...]
    vh = jnp.einsum("hrd,hde->hre", vb, wv_ref[...],
                    preferred_element_type=jnp.float32) + bv_ref[...]

    wo = wo_ref[...]        # (H, d_v, D)
    bo = bo_ref[...]        # (1, D)
    gamma = gamma_ref[...]  # (1, D)
    beta = beta_ref[...]    # (1, D)

    # Static unroll over the (small) batch chunk; attention is per batch element.
    for b in range(bb):
        r0, r1 = b * S, (b + 1) * S
        qh_b = qh[:, r0:r1, :]          # (H, S, d_k)  — sublane-aligned slice
        kh_b = kh[:, r0:r1, :]
        vh_b = vh[:, r0:r1, :]

        # Scores: contract on d_k of both operands (no explicit kh.T transpose).
        scores = jnp.einsum("hqd,hkd->hqk", qh_b, kh_b,
                            preferred_element_type=jnp.float32) * scale
        scores = scores - jnp.max(scores, axis=-1, keepdims=True)
        e = jnp.exp(scores)
        attn = e * pl.reciprocal(jnp.sum(e, axis=-1, keepdims=True), approx=False)
        ctx = jnp.einsum("hqk,hkd->hqd", attn, vh_b,
                         preferred_element_type=jnp.float32)   # (H, S, d_v)

        # Output projection folded over heads: sum_h ctx[h] @ wo[h]  (no concat).
        out_b = jnp.einsum("hqv,hvm->hqm", ctx, wo,
                           preferred_element_type=jnp.float32).sum(axis=0) + bo

        # Residual + LayerNorm (biased variance, matching torch).
        x = out_b + q2[r0:r1, :]
        mean = jnp.mean(x, axis=-1, keepdims=True)
        var = jnp.mean((x - mean) ** 2, axis=-1, keepdims=True)
        y = (x - mean) * jax.lax.rsqrt(var + eps)
        y = y * gamma + beta

        out_ref[b] = y.astype(out_ref.dtype)


def _const_index_map(ndim):
    return lambda b: (0,) * ndim


def multi_head_attention(Q, K, V, params, *, n_heads, d_k, d_v, eps=1e-5,
                         block_b=None):
    B, S, D = Q.shape
    wq, bq, wk, bk, wv, bv, wo, bo, gamma, beta = params

    if block_b is None:
        # Fold the batch into few grid steps, but keep >=2 "parallel" steps
        # (megacore) whenever the batch splits evenly.
        block_b = B // 2 if (B >= 2 and B % 2 == 0) else B
    assert B % block_b == 0, "batch must be divisible by block_b"
    grid_b = B // block_b

    # Pre-arrange weights head-major in plain JAX (outside the kernel) so the
    # kernel never slices the lane axis per head and never concatenates heads.
    wq_h = jnp.transpose(wq.reshape(D, n_heads, d_k), (1, 0, 2))   # (H, D, d_k)
    wk_h = jnp.transpose(wk.reshape(D, n_heads, d_k), (1, 0, 2))
    wv_h = jnp.transpose(wv.reshape(D, n_heads, d_v), (1, 0, 2))
    bq_h = bq.reshape(n_heads, 1, d_k)
    bk_h = bk.reshape(n_heads, 1, d_k)
    bv_h = bv.reshape(n_heads, 1, d_v)
    wo_h = wo.reshape(n_heads, d_v, D)                              # (H, d_v, D)

    kernel = functools.partial(_mha_kernel, eps=eps)

    seq_spec = pl.BlockSpec((block_b, S, D), lambda b: (b, 0, 0))

    def full(arr):
        return pl.BlockSpec(arr.shape, _const_index_map(arr.ndim))

    return pl.pallas_call(
        kernel,
        out_shape=jax.ShapeDtypeStruct((B, S, D), jnp.float32),
        grid_spec=pltpu.PrefetchScalarGridSpec(
            num_scalar_prefetch=0,
            grid=(grid_b,),
            in_specs=[
                seq_spec, seq_spec, seq_spec,
                full(wq_h), full(bq_h),
                full(wk_h), full(bk_h),
                full(wv_h), full(bv_h),
                full(wo_h), full(bo),
                full(gamma), full(beta),
            ],
            out_specs=seq_spec,
        ),
        compiler_params=pltpu.CompilerParams(
            dimension_semantics=("parallel",),
            vmem_limit_bytes=32 * 1024 * 1024,
        ),
    )(Q, K, V, wq_h, bq_h, wk_h, bk_h, wv_h, bv_h, wo_h, bo, gamma, beta)


def _reference(Q, K, V, params, *, n_heads, d_k, d_v, eps=1e-5):
    wq, bq, wk, bk, wv, bv, wo, bo, gamma, beta = params
    B, S, D = Q.shape
    qp = (Q @ wq + bq).reshape(B, S, n_heads, d_k).transpose(0, 2, 1, 3)
    kp = (K @ wk + bk).reshape(B, S, n_heads, d_k).transpose(0, 2, 1, 3)
    vp = (V @ wv + bv).reshape(B, S, n_heads, d_v).transpose(0, 2, 1, 3)
    scores = jnp.einsum("bhqd,bhkd->bhqk", qp, kp) / jnp.sqrt(jnp.float32(S))
    attn = jax.nn.softmax(scores, axis=-1)
    ctx = jnp.einsum("bhqk,bhkd->bhqd", attn, vp)
    ctx = ctx.transpose(0, 2, 1, 3).reshape(B, S, n_heads * d_v)
    out = ctx @ wo + bo
    x = out + Q
    mean = jnp.mean(x, axis=-1, keepdims=True)
    var = jnp.mean((x - mean) ** 2, axis=-1, keepdims=True)
    return (x - mean) / jnp.sqrt(var + eps) * gamma + beta


if __name__ == "__main__":
    # Small, module-consistent shapes.
    B, S, d_model = 2, 8, 32
    n_heads, d_k, d_v = 4, 16, 16

    key = jax.random.PRNGKey(0)
    ks = jax.random.split(key, 12)

    Q = jax.random.normal(ks[0], (B, S, d_model), jnp.float32)
    K = jax.random.normal(ks[1], (B, S, d_model), jnp.float32)
    V = jax.random.normal(ks[2], (B, S, d_model), jnp.float32)

    def linear_params(kw, kb, fan_in, fan_out):
        bound = 1.0 / math.sqrt(fan_in)
        # weight stored as (in, out), i.e. torch weight.T
        w = jax.random.uniform(kw, (fan_in, fan_out), jnp.float32, -bound, bound)
        b = jax.random.uniform(kb, (1, fan_out), jnp.float32, -bound, bound)
        return w, b

    wq, bq = linear_params(ks[3], ks[4], d_model, d_k * n_heads)
    wk, bk = linear_params(ks[5], ks[6], d_model, d_k * n_heads)
    wv, bv = linear_params(ks[7], ks[8], d_model, d_v * n_heads)
    wo, bo = linear_params(ks[9], ks[10], d_v * n_heads, d_model)
    gamma = jnp.ones((1, d_model), jnp.float32)
    beta = jnp.zeros((1, d_model), jnp.float32)

    params = (wq, bq, wk, bk, wv, bv, wo, bo, gamma, beta)

    out = multi_head_attention(Q, K, V, params, n_heads=n_heads, d_k=d_k, d_v=d_v)
    out = jax.block_until_ready(out)

    ref = _reference(Q, K, V, params, n_heads=n_heads, d_k=d_k, d_v=d_v)
    assert out.shape == (B, S, d_model)
    assert jnp.allclose(out, ref, atol=1e-4, rtol=1e-4), "mismatch vs JAX reference"

    print("KERNEL_OK")
</pallas_src>

<mosaic_0001>
module attributes {stable_mosaic.version = 11 : i64} {
  func.func @_mha_kernel(%arg0: i32, %arg1: memref<1x8x32xf32, #tpu.memory_space<vmem>>, %arg2: memref<1x8x32xf32, #tpu.memory_space<vmem>>, %arg3: memref<1x8x32xf32, #tpu.memory_space<vmem>>, %arg4: memref<4x32x16xf32, #tpu.memory_space<vmem>>, %arg5: memref<4x1x16xf32, #tpu.memory_space<vmem>>, %arg6: memref<4x32x16xf32, #tpu.memory_space<vmem>>, %arg7: memref<4x1x16xf32, #tpu.memory_space<vmem>>, %arg8: memref<4x32x16xf32, #tpu.memory_space<vmem>>, %arg9: memref<4x1x16xf32, #tpu.memory_space<vmem>>, %arg10: memref<4x16x32xf32, #tpu.memory_space<vmem>>, %arg11: memref<1x32xf32, #tpu.memory_space<vmem>>, %arg12: memref<1x32xf32, #tpu.memory_space<vmem>>, %arg13: memref<1x32xf32, #tpu.memory_space<vmem>>, %arg14: memref<1x8x32xf32, #tpu.memory_space<vmem>>) attributes {dimension_semantics = [#tpu.dimension_semantics<parallel>], iteration_bounds = array<i64: 2>, scalar_prefetch = 0 : i64, scratch_operands = 0 : i64, tpu.core_type = #tpu.core_type<tc>, window_params = [{transform_indices = @transform_0, window_bounds = array<i64: 1, 8, 32>}, {transform_indices = @transform_1, window_bounds = array<i64: 1, 8, 32>}, {transform_indices = @transform_2, window_bounds = array<i64: 1, 8, 32>}, {pipeline_mode = #tpu.pipeline_mode<synchronous>, transform_indices = @transform_3, window_bounds = array<i64: 4, 32, 16>}, {pipeline_mode = #tpu.pipeline_mode<synchronous>, transform_indices = @transform_4, window_bounds = array<i64: 4, 1, 16>}, {pipeline_mode = #tpu.pipeline_mode<synchronous>, transform_indices = @transform_5, window_bounds = array<i64: 4, 32, 16>}, {pipeline_mode = #tpu.pipeline_mode<synchronous>, transform_indices = @transform_6, window_bounds = array<i64: 4, 1, 16>}, {pipeline_mode = #tpu.pipeline_mode<synchronous>, transform_indices = @transform_7, window_bounds = array<i64: 4, 32, 16>}, {pipeline_mode = #tpu.pipeline_mode<synchronous>, transform_indices = @transform_8, window_bounds = array<i64: 4, 1, 16>}, {pipeline_mode = #tpu.pipeline_mode<synchronous>, transform_indices = @transform_9, window_bounds = array<i64: 4, 16, 32>}, {pipeline_mode = #tpu.pipeline_mode<synchronous>, transform_indices = @transform_10, window_bounds = array<i64: 1, 32>}, {pipeline_mode = #tpu.pipeline_mode<synchronous>, transform_indices = @transform_11, window_bounds = array<i64: 1, 32>}, {pipeline_mode = #tpu.pipeline_mode<synchronous>, transform_indices = @transform_12, window_bounds = array<i64: 1, 32>}, {transform_indices = @transform_13, window_bounds = array<i64: 1, 8, 32>}]} {
    %c0 = arith.constant 0 : index
    %c0_0 = arith.constant 0 : index
    %c0_1 = arith.constant 0 : index
    %0 = vector.load %arg1[%c0, %c0_0, %c0_1] : memref<1x8x32xf32, #tpu.memory_space<vmem>>, vector<1x8x32xf32>
    %1 = vector.shape_cast %0 : vector<1x8x32xf32> to vector<8x32xf32>
    %c0_2 = arith.constant 0 : index
    %c0_3 = arith.constant 0 : index
    %c0_4 = arith.constant 0 : index
    %2 = vector.load %arg2[%c0_2, %c0_3, %c0_4] : memref<1x8x32xf32, #tpu.memory_space<vmem>>, vector<1x8x32xf32>
    %3 = vector.shape_cast %2 : vector<1x8x32xf32> to vector<8x32xf32>
    %c0_5 = arith.constant 0 : index
    %c0_6 = arith.constant 0 : index
    %c0_7 = arith.constant 0 : index
    %4 = vector.load %arg3[%c0_5, %c0_6, %c0_7] : memref<1x8x32xf32, #tpu.memory_space<vmem>>, vector<1x8x32xf32>
    %5 = vector.shape_cast %4 : vector<1x8x32xf32> to vector<8x32xf32>
    %6 = vector.shape_cast %1 : vector<8x32xf32> to vector<1x8x32xf32>
    %7 = vector.broadcast %6 : vector<1x8x32xf32> to vector<4x8x32xf32>
    %8 = vector.shape_cast %3 : vector<8x32xf32> to vector<1x8x32xf32>
    %9 = vector.broadcast %8 : vector<1x8x32xf32> to vector<4x8x32xf32>
    %10 = vector.shape_cast %5 : vector<8x32xf32> to vector<1x8x32xf32>
    %11 = vector.broadcast %10 : vector<1x8x32xf32> to vector<4x8x32xf32>
    %c0_8 = arith.constant 0 : index
    %c0_9 = arith.constant 0 : index
    %c0_10 = arith.constant 0 : index
    %12 = vector.load %arg4[%c0_8, %c0_9, %c0_10] : memref<4x32x16xf32, #tpu.memory_space<vmem>>, vector<4x32x16xf32>
    "tpu.trace_start"() <{level = 10 : i32, message = "hrd,hde->hre"}> : () -> ()
    %cst = arith.constant dense<0.000000e+00> : vector<4x8x16xf32>
    %13 = tpu.matmul %7, %12, %cst {dimension_numbers = #tpu.dot_dimension_numbers<[2], [1], [1], [2], [0, 0, 0, 1, 1, 2], [0], [0]>} : vector<4x8x32xf32>, vector<4x32x16xf32>, vector<4x8x16xf32> -> vector<4x8x16xf32>
    "tpu.trace_stop"() : () -> ()
    %c0_11 = arith.constant 0 : index
    %c0_12 = arith.constant 0 : index
    %c0_13 = arith.constant 0 : index
    %14 = vector.load %arg5[%c0_11, %c0_12, %c0_13] : memref<4x1x16xf32, #tpu.memory_space<vmem>>, vector<4x1x16xf32>
    %15 = vector.broadcast %14 : vector<4x1x16xf32> to vector<4x8x16xf32>
    %16 = arith.addf %13, %15 : vector<4x8x16xf32>
    %c0_14 = arith.constant 0 : index
    %c0_15 = arith.constant 0 : index
    %c0_16 = arith.constant 0 : index
    %17 = vector.load %arg6[%c0_14, %c0_15, %c0_16] : memref<4x32x16xf32, #tpu.memory_space<vmem>>, vector<4x32x16xf32>
    "tpu.trace_start"() <{level = 10 : i32, message = "hrd,hde->hre"}> : () -> ()
    %cst_17 = arith.constant dense<0.000000e+00> : vector<4x8x16xf32>
    %18 = tpu.matmul %9, %17, %cst_17 {dimension_numbers = #tpu.dot_dimension_numbers<[2], [1], [1], [2], [0, 0, 0, 1, 1, 2], [0], [0]>} : vector<4x8x32xf32>, vector<4x32x16xf32>, vector<4x8x16xf32> -> vector<4x8x16xf32>
    "tpu.trace_stop"() : () -> ()
    %c0_18 = arith.constant 0 : index
    %c0_19 = arith.constant 0 : index
    %c0_20 = arith.constant 0 : index
    %19 = vector.load %arg7[%c0_18, %c0_19, %c0_20] : memref<4x1x16xf32, #tpu.memory_space<vmem>>, vector<4x1x16xf32>
    %20 = vector.broadcast %19 : vector<4x1x16xf32> to vector<4x8x16xf32>
    %21 = arith.addf %18, %20 : vector<4x8x16xf32>
    %c0_21 = arith.constant 0 : index
    %c0_22 = arith.constant 0 : index
    %c0_23 = arith.constant 0 : index
    %22 = vector.load %arg8[%c0_21, %c0_22, %c0_23] : memref<4x32x16xf32, #tpu.memory_space<vmem>>, vector<4x32x16xf32>
    "tpu.trace_start"() <{level = 10 : i32, message = "hrd,hde->hre"}> : () -> ()
    %cst_24 = arith.constant dense<0.000000e+00> : vector<4x8x16xf32>
    %23 = tpu.matmul %11, %22, %cst_24 {dimension_numbers = #tpu.dot_dimension_numbers<[2], [1], [1], [2], [0, 0, 0, 1, 1, 2], [0], [0]>} : vector<4x8x32xf32>, vector<4x32x16xf32>, vector<4x8x16xf32> -> vector<4x8x16xf32>
    "tpu.trace_stop"() : () -> ()
    %c0_25 = arith.constant 0 : index
    %c0_26 = arith.constant 0 : index
    %c0_27 = arith.constant 0 : index
    %24 = vector.load %arg9[%c0_25, %c0_26, %c0_27] : memref<4x1x16xf32, #tpu.memory_space<vmem>>, vector<4x1x16xf32>
    %25 = vector.broadcast %24 : vector<4x1x16xf32> to vector<4x8x16xf32>
    %26 = arith.addf %23, %25 : vector<4x8x16xf32>
    %c0_28 = arith.constant 0 : index
    %c0_29 = arith.constant 0 : index
    %c0_30 = arith.constant 0 : index
    %27 = vector.load %arg10[%c0_28, %c0_29, %c0_30] : memref<4x16x32xf32, #tpu.memory_space<vmem>>, vector<4x16x32xf32>
    %c0_31 = arith.constant 0 : index
    %c0_32 = arith.constant 0 : index
    %28 = vector.load %arg11[%c0_31, %c0_32] : memref<1x32xf32, #tpu.memory_space<vmem>>, vector<1x32xf32>
    %c0_33 = arith.constant 0 : index
    %c0_34 = arith.constant 0 : index
    %29 = vector.load %arg12[%c0_33, %c0_34] : memref<1x32xf32, #tpu.memory_space<vmem>>, vector<1x32xf32>
    %c0_35 = arith.constant 0 : index
    %c0_36 = arith.constant 0 : index
    %30 = vector.load %arg13[%c0_35, %c0_36] : memref<1x32xf32, #tpu.memory_space<vmem>>, vector<1x32xf32>
    "tpu.trace_start"() <{level = 10 : i32, message = "hqd,hkd->hqk"}> : () -> ()
    %cst_37 = arith.constant dense<0.000000e+00> : vector<4x8x8xf32>
    %31 = tpu.matmul %16, %21, %cst_37 {dimension_numbers = #tpu.dot_dimension_numbers<[2], [2], [1], [1], [0, 0, 0, 1, 1, 1], [0], [0]>} : vector<4x8x16xf32>, vector<4x8x16xf32>, vector<4x8x8xf32> -> vector<4x8x8xf32>
    "tpu.trace_stop"() : () -> ()
    %cst_38 = arith.constant 0.353553385 : f32
    %32 = vector.broadcast %cst_38 : f32 to vector<4x8x8xf32>
    %33 = arith.mulf %31, %32 : vector<4x8x8xf32>
    %cst_39 = arith.constant dense<0xFF800000> : vector<4x8xf32>
    %34 = vector.multi_reduction <maximumf>, %33, %cst_39 [2] : vector<4x8x8xf32> to vector<4x8xf32>
    %35 = vector.shape_cast %34 : vector<4x8xf32> to vector<4x8x1xf32>
    %36 = vector.broadcast %35 : vector<4x8x1xf32> to vector<4x8x8xf32>
    %37 = arith.subf %33, %36 : vector<4x8x8xf32>
    %38 = math.exp %37 : vector<4x8x8xf32>
    %cst_40 = arith.constant dense<0.000000e+00> : vector<4x8xf32>
    %39 = vector.multi_reduction <add>, %38, %cst_40 [2] : vector<4x8x8xf32> to vector<4x8xf32>
    %40 = vector.shape_cast %39 : vector<4x8xf32> to vector<4x8x1xf32>
    %41 = tpu.reciprocal %40 : vector<4x8x1xf32> -> vector<4x8x1xf32>
    %42 = vector.broadcast %41 : vector<4x8x1xf32> to vector<4x8x8xf32>
    %43 = arith.mulf %38, %42 : vector<4x8x8xf32>
    "tpu.trace_start"() <{level = 10 : i32, message = "hqk,hkd->hqd"}> : () -> ()
    %cst_41 = arith.constant dense<0.000000e+00> : vector<4x8x16xf32>
    %44 = tpu.matmul %43, %26, %cst_41 {dimension_numbers = #tpu.dot_dimension_numbers<[2], [1], [1], [2], [0, 0, 0, 1, 1, 2], [0], [0]>} : vector<4x8x8xf32>, vector<4x8x16xf32>, vector<4x8x16xf32> -> vector<4x8x16xf32>
    "tpu.trace_stop"() : () -> ()
    "tpu.trace_start"() <{level = 10 : i32, message = "hqv,hvm->hqm"}> : () -> ()
    %cst_42 = arith.constant dense<0.000000e+00> : vector<4x8x32xf32>
    %45 = tpu.matmul %44, %27, %cst_42 {dimension_numbers = #tpu.dot_dimension_numbers<[2], [1], [1], [2], [0, 0, 0, 1, 1, 2], [0], [0]>} : vector<4x8x16xf32>, vector<4x16x32xf32>, vector<4x8x32xf32> -> vector<4x8x32xf32>
    "tpu.trace_stop"() : () -> ()
    %cst_43 = arith.constant dense<0.000000e+00> : vector<8x32xf32>
    %46 = vector.multi_reduction <add>, %45, %cst_43 [0] : vector<4x8x32xf32> to vector<8x32xf32>
    %47 = vector.broadcast %28 : vector<1x32xf32> to vector<8x32xf32>
    %48 = arith.addf %46, %47 : vector<8x32xf32>
    %49 = arith.addf %48, %1 : vector<8x32xf32>
    %cst_44 = arith.constant dense<0.000000e+00> : vector<8xf32>
    %50 = vector.multi_reduction <add>, %49, %cst_44 [1] : vector<8x32xf32> to vector<8xf32>
    %51 = vector.shape_cast %50 : vector<8xf32> to vector<8x1xf32>
    %cst_45 = arith.constant 3.200000e+01 : f32
    %52 = vector.broadcast %cst_45 : f32 to vector<8x1xf32>
    %53 = arith.divf %51, %52 : vector<8x1xf32>
    %54 = vector.broadcast %53 : vector<8x1xf32> to vector<8x32xf32>
    %55 = arith.subf %49, %54 : vector<8x32xf32>
    %56 = arith.mulf %55, %55 : vector<8x32xf32>
    %cst_46 = arith.constant dense<0.000000e+00> : vector<8xf32>
    %57 = vector.multi_reduction <add>, %56, %cst_46 [1] : vector<8x32xf32> to vector<8xf32>
    %58 = vector.shape_cast %57 : vector<8xf32> to vector<8x1xf32>
    %cst_47 = arith.constant 3.200000e+01 : f32
    %59 = vector.broadcast %cst_47 : f32 to vector<8x1xf32>
    %60 = arith.divf %58, %59 : vector<8x1xf32>
    %61 = vector.broadcast %53 : vector<8x1xf32> to vector<8x32xf32>
    %62 = arith.subf %49, %61 : vector<8x32xf32>
    %cst_48 = arith.constant 9.99999974E-6 : f32
    %63 = vector.broadcast %cst_48 : f32 to vector<8x1xf32>
    %64 = arith.addf %60, %63 : vector<8x1xf32>
    %65 = math.rsqrt %64 : vector<8x1xf32>
    %66 = vector.broadcast %65 : vector<8x1xf32> to vector<8x32xf32>
    %67 = arith.mulf %62, %66 : vector<8x32xf32>
    %68 = vector.broadcast %29 : vector<1x32xf32> to vector<8x32xf32>
    %69 = arith.mulf %67, %68 : vector<8x32xf32>
    %70 = vector.broadcast %30 : vector<1x32xf32> to vector<8x32xf32>
    %71 = arith.addf %69, %70 : vector<8x32xf32>
    %c0_49 = arith.constant 0 : index
    %c0_50 = arith.constant 0 : index
    %c0_51 = arith.constant 0 : index
    %72 = vector.load %arg14[%c0_49, %c0_50, %c0_51] : memref<1x8x32xf32, #tpu.memory_space<vmem>>, vector<1x8x32xf32>
    %73 = vector.shape_cast %72 : vector<1x8x32xf32> to vector<8x32xf32>
    %74 = vector.shape_cast %71 : vector<8x32xf32> to vector<1x8x32xf32>
    tpu.vector_store %arg14[%c0_49, %c0_50, %c0_51], %74 {strides = array<i32>} : memref<1x8x32xf32, #tpu.memory_space<vmem>>, vector<1x8x32xf32>,
    return
  }
  func.func @transform_0(%arg0: i32) -> (i32, i32, i32) {
    %c0_i32 = arith.constant 0 : i32
    %c0_i32_0 = arith.constant 0 : i32
    %c0_i32_1 = arith.constant 0 : i32
    return %arg0, %c0_i32, %c0_i32_0 : i32, i32, i32
  }
  func.func @transform_1(%arg0: i32) -> (i32, i32, i32) {
    %c0_i32 = arith.constant 0 : i32
    %c0_i32_0 = arith.constant 0 : i32
    %c0_i32_1 = arith.constant 0 : i32
    return %arg0, %c0_i32, %c0_i32_0 : i32, i32, i32
  }
  func.func @transform_2(%arg0: i32) -> (i32, i32, i32) {
    %c0_i32 = arith.constant 0 : i32
    %c0_i32_0 = arith.constant 0 : i32
    %c0_i32_1 = arith.constant 0 : i32
    return %arg0, %c0_i32, %c0_i32_0 : i32, i32, i32
  }
  func.func @transform_3(%arg0: i32) -> (i32, i32, i32) {
    %c0_i32 = arith.constant 0 : i32
    %c0_i32_0 = arith.constant 0 : i32
    %c0_i32_1 = arith.constant 0 : i32
    %c0_i32_2 = arith.constant 0 : i32
    return %c0_i32, %c0_i32_0, %c0_i32_1 : i32, i32, i32
  }
  func.func @transform_4(%arg0: i32) -> (i32, i32, i32) {
    %c0_i32 = arith.constant 0 : i32
    %c0_i32_0 = arith.constant 0 : i32
    %c0_i32_1 = arith.constant 0 : i32
    %c0_i32_2 = arith.constant 0 : i32
    return %c0_i32, %c0_i32_0, %c0_i32_1 : i32, i32, i32
  }
  func.func @transform_5(%arg0: i32) -> (i32, i32, i32) {
    %c0_i32 = arith.constant 0 : i32
    %c0_i32_0 = arith.constant 0 : i32
    %c0_i32_1 = arith.constant 0 : i32
    %c0_i32_2 = arith.constant 0 : i32
    return %c0_i32, %c0_i32_0, %c0_i32_1 : i32, i32, i32
  }
  func.func @transform_6(%arg0: i32) -> (i32, i32, i32) {
    %c0_i32 = arith.constant 0 : i32
    %c0_i32_0 = arith.constant 0 : i32
    %c0_i32_1 = arith.constant 0 : i32
    %c0_i32_2 = arith.constant 0 : i32
    return %c0_i32, %c0_i32_0, %c0_i32_1 : i32, i32, i32
  }
  func.func @transform_7(%arg0: i32) -> (i32, i32, i32) {
    %c0_i32 = arith.constant 0 : i32
    %c0_i32_0 = arith.constant 0 : i32
    %c0_i32_1 = arith.constant 0 : i32
    %c0_i32_2 = arith.constant 0 : i32
    return %c0_i32, %c0_i32_0, %c0_i32_1 : i32, i32, i32
  }
  func.func @transform_8(%arg0: i32) -> (i32, i32, i32) {
    %c0_i32 = arith.constant 0 : i32
    %c0_i32_0 = arith.constant 0 : i32
    %c0_i32_1 = arith.constant 0 : i32
    %c0_i32_2 = arith.constant 0 : i32
    return %c0_i32, %c0_i32_0, %c0_i32_1 : i32, i32, i32
  }
  func.func @transform_9(%arg0: i32) -> (i32, i32, i32) {
    %c0_i32 = arith.constant 0 : i32
    %c0_i32_0 = arith.constant 0 : i32
    %c0_i32_1 = arith.constant 0 : i32
    %c0_i32_2 = arith.constant 0 : i32
    return %c0_i32, %c0_i32_0, %c0_i32_1 : i32, i32, i32
  }
  func.func @transform_10(%arg0: i32) -> (i32, i32) {
    %c0_i32 = arith.constant 0 : i32
    %c0_i32_0 = arith.constant 0 : i32
    %c0_i32_1 = arith.constant 0 : i32
    return %c0_i32, %c0_i32_0 : i32, i32
  }
  func.func @transform_11(%arg0: i32) -> (i32, i32) {
    %c0_i32 = arith.constant 0 : i32
    %c0_i32_0 = arith.constant 0 : i32
    %c0_i32_1 = arith.constant 0 : i32
    return %c0_i32, %c0_i32_0 : i32, i32
  }
  func.func @transform_12(%arg0: i32) -> (i32, i32) {
    %c0_i32 = arith.constant 0 : i32
    %c0_i32_0 = arith.constant 0 : i32
    %c0_i32_1 = arith.constant 0 : i32
    return %c0_i32, %c0_i32_0 : i32, i32
  }
  func.func @transform_13(%arg0: i32) -> (i32, i32, i32) {
    %c0_i32 = arith.constant 0 : i32
    %c0_i32_0 = arith.constant 0 : i32
    %c0_i32_1 = arith.constant 0 : i32
    return %arg0, %c0_i32, %c0_i32_0 : i32, i32, i32
  }
}

</mosaic_0001>

<llo_original>
// kernel: tpu_custom_call.1
$region0: #{tpu_custom_call.1}
  #allocation0 [shape = 'u32[]', space=smem, size = 0x4, offset = 0x4, fixed_abs, tag = 'smem constant byte address 0x4 - core index']
  #allocation1 [shape = 'u32[144,128]{1,0:T(1,128)}', space=vmem, size = 0x12000, scoped, tag = 'internal scratch']
  %s0 = inlined_call_operand.vmem [shape: f32[2,8,32], index: 0, kind: input, shape index: {}]
  %s1 = inlined_call_operand.vmem [shape: f32[2,8,32], index: 1, kind: input, shape index: {}]
  %s2 = inlined_call_operand.vmem [shape: f32[2,8,32], index: 2, kind: input, shape index: {}]
  %s3 = inlined_call_operand.vmem [shape: f32[4,32,16], index: 3, kind: input, shape index: {}]
  %s4 = inlined_call_operand.vmem [shape: f32[4,1,16], index: 4, kind: input, shape index: {}]
  %s5 = inlined_call_operand.vmem [shape: f32[4,32,16], index: 5, kind: input, shape index: {}]
  %s6 = inlined_call_operand.vmem [shape: f32[4,1,16], index: 6, kind: input, shape index: {}]
  %s7 = inlined_call_operand.vmem [shape: f32[4,32,16], index: 7, kind: input, shape index: {}]
  %s8 = inlined_call_operand.vmem [shape: f32[4,1,16], index: 8, kind: input, shape index: {}]
  %s9 = inlined_call_operand.vmem [shape: f32[4,16,32], index: 9, kind: input, shape index: {}]
  %s10 = inlined_call_operand.vmem [shape: f32[1,32], index: 10, kind: input, shape index: {}]
  %s11 = inlined_call_operand.vmem [shape: f32[1,32], index: 11, kind: input, shape index: {}]
  %s12 = inlined_call_operand.vmem [shape: f32[1,32], index: 12, kind: input, shape index: {}]
  %s13 = inlined_call_operand.hbm [shape: f32[2,8,32], index: 13, kind: output, shape index: {}]
  %s14 = sld [smem:[#allocation0]]
  $region85: #{tpu_custom_call.1} parent=0
    _
  %s16 = ssub.s32 1, %s14
  %s17 = scalar_select 0, %s16, %s14
  $region1: #{tpu_custom_call.1} parent=0
    #allocation2 [shape = 'u8[8192]{0}', space=vmem, size = 0x2000, scoped, tag = 'output window, operand 0']
    #allocation3 [shape = 's32[2]{0}', space=sflag, size = 0x8, scoped, tag = 'scoped memory for tpu_custom_call.1']
    %18 = vsyncpa [#allocation3], 0
    %s19 = scalar_lea.sflag [#allocation3], 1
    %20 = vsyncpa %s19, 0
    loop: start=0, step=1, limit=4
    $region2: #{tpu_custom_call.1} parent=1 // loop_pre_header
      _
    $region3: #{tpu_custom_call.1} parent=1 // loop_header
      %s22 = sphi 0, %s26
      %p23 = scmp.ge.s32.totalorder %s22, 4
      %s32 = sphi 0, %s34
      %s35 = sphi 0, %s32
      %s36 = sphi 0, %s35
      %s52 = sphi 0, %s36
      %s58 = sphi 0, %s60
      %s61 = sphi 0, %s58
      %s62 = sphi 0, %s61
      %s78 = sphi 0, %s62
      %s84 = sphi 0, %s86
      %s87 = sphi 0, %s84
      %s88 = sphi 0, %s87
      %s104 = sphi 0, %s88
      %s108 = sphi 0, %s108
      %s110 = sphi 0, %s108
      %s111 = sphi 0, %s110
      %s125 = sphi 0, %s111
      %s129 = sphi 0, %s129
      %s131 = sphi 0, %s129
      %s132 = sphi 0, %s131
      %s146 = sphi 0, %s132
      %s150 = sphi 0, %s150
      %s152 = sphi 0, %s150
      %s153 = sphi 0, %s152
      %s167 = sphi 0, %s153
      %s171 = sphi 0, %s171
      %s173 = sphi 0, %s171
      %s174 = sphi 0, %s173
      %s188 = sphi 0, %s174
      %s192 = sphi 0, %s192
      %s194 = sphi 0, %s192
      %s195 = sphi 0, %s194
      %s209 = sphi 0, %s195
      %s213 = sphi 0, %s213
      %s215 = sphi 0, %s213
      %s216 = sphi 0, %s215
      %s230 = sphi 0, %s216
      %s234 = sphi 0, %s234
      %s236 = sphi 0, %s234
      %s237 = sphi 0, %s236
      %s251 = sphi 0, %s237
      %s255 = sphi 0, %s255
      %s257 = sphi 0, %s255
      %s258 = sphi 0, %s257
      %s272 = sphi 0, %s258
      %s276 = sphi 0, %s276
      %s278 = sphi 0, %s276
      %s279 = sphi 0, %s278
      %s293 = sphi 0, %s279
      %s297 = sphi 0, %s297
      %s299 = sphi 0, %s297
      %s300 = sphi 0, %s299
      %s314 = sphi 0, %s300
      %s320 = sphi 0, %s322
      %s323 = sphi 0, %s320
      %s324 = sphi 0, %s323
      %s340 = sphi 0, %s324
    $region4: #{tpu_custom_call.1} parent=1 // loop_header_branch
      %25 = sbr.rel (%p23) target = $region8
    $region5: #{tpu_custom_call.1} parent=1 // loop_body
      %s27 = ssub.s32 %s22, 1
      %s28 = ssub.s32 %s22, 2
      %s29 = sadd.s32 %s22, 1
      %s30 = ssub.s32 %s22, %s29
      %p31 = scmp.eq.s32.totalorder %s30, 0
      %s33 = sadd.s32 %s32, 1
      %s34 = scalar_select %p31, %s32, %s33
      %p37 = pneg %p31
      %p38 = scmp.eq.s32.totalorder %s22, 1
      %p39 = por %p37, %p38
      %p40 = scmp.ne.s32.totalorder %s32, %s35
      %p41 = scmp.eq.s32.totalorder %s22, 0
      %p42 = por %p40, %p41
      %p43 = scmp.ne.s32.totalorder %s32, %s35
      %p44 = scmp.eq.s32.totalorder %s27, 1
      %p45 = por %p43, %p44
      %p46 = scmp.ne.s32.totalorder %s35, %s36
      %p47 = scmp.eq.s32.totalorder %s27, 0
      %p48 = por %p46, %p47
      %p49 = scmp.ne.s32.totalorder %s35, %s36
      %p50 = scmp.eq.s32.totalorder %s28, 1
      %p51 = por %p49, %p50
      %p53 = scmp.ne.s32.totalorder %s36, %s52
      %p54 = scmp.eq.s32.totalorder %s28, 0
      %p55 = por %p53, %p54
      %s56 = ssub.s32 %s22, %s29
      %p57 = scmp.eq.s32.totalorder %s56, 0
      %s59 = sadd.s32 %s58, 1
      %s60 = scalar_select %p57, %s58, %s59
      %p63 = pneg %p57
      %p64 = scmp.eq.s32.totalorder %s22, 1
      %p65 = por %p63, %p64
      %p66 = scmp.ne.s32.totalorder %s58, %s61
      %p67 = scmp.eq.s32.totalorder %s22, 0
      %p68 = por %p66, %p67
      %p69 = scmp.ne.s32.totalorder %s58, %s61
      %p70 = scmp.eq.s32.totalorder %s27, 1
      %p71 = por %p69, %p70
      %p72 = scmp.ne.s32.totalorder %s61, %s62
      %p73 = scmp.eq.s32.totalorder %s27, 0
      %p74 = por %p72, %p73
      %p75 = scmp.ne.s32.totalorder %s61, %s62
      %p76 = scmp.eq.s32.totalorder %s28, 1
      %p77 = por %p75, %p76
      %p79 = scmp.ne.s32.totalorder %s62, %s78
      %p80 = scmp.eq.s32.totalorder %s28, 0
      %p81 = por %p79, %p80
      %s82 = ssub.s32 %s22, %s29
      %p83 = scmp.eq.s32.totalorder %s82, 0
      %s85 = sadd.s32 %s84, 1
      %s86 = scalar_select %p83, %s84, %s85
      %p89 = pneg %p83
      %p90 = scmp.eq.s32.totalorder %s22, 1
      %p91 = por %p89, %p90
      %p92 = scmp.ne.s32.totalorder %s84, %s87
      %p93 = scmp.eq.s32.totalorder %s22, 0
      %p94 = por %p92, %p93
      %p95 = scmp.ne.s32.totalorder %s84, %s87
      %p96 = scmp.eq.s32.totalorder %s27, 1
      %p97 = por %p95, %p96
      %p98 = scmp.ne.s32.totalorder %s87, %s88
      %p99 = scmp.eq.s32.totalorder %s27, 0
      %p100 = por %p98, %p99
      %p101 = scmp.ne.s32.totalorder %s87, %s88
      %p102 = scmp.eq.s32.totalorder %s28, 1
      %p103 = por %p101, %p102
      %p105 = scmp.ne.s32.totalorder %s88, %s104
      %p106 = scmp.eq.s32.totalorder %s28, 0
      %p107 = por %p105, %p106
      %s109 = sadd.s32 %s108, 1
      %p112 = scmp.eq.s32.totalorder %s22, 1
      %p113 = scmp.ne.s32.totalorder %s108, %s110
      %p114 = scmp.eq.s32.totalorder %s22, 0
      %p115 = por %p113, %p114
      %p116 = scmp.ne.s32.totalorder %s108, %s110
      %p117 = scmp.eq.s32.totalorder %s27, 1
      %p118 = por %p116, %p117
      %p119 = scmp.ne.s32.totalorder %s110, %s111
      %p120 = scmp.eq.s32.totalorder %s27, 0
      %p121 = por %p119, %p120
      %p122 = scmp.ne.s32.totalorder %s110, %s111
      %p123 = scmp.eq.s32.totalorder %s28, 1
      %p124 = por %p122, %p123
      %p126 = scmp.ne.s32.totalorder %s111, %s125
      %p127 = scmp.eq.s32.totalorder %s28, 0
      %p128 = por %p126, %p127
      %s130 = sadd.s32 %s129, 1
      %p133 = scmp.eq.s32.totalorder %s22, 1
      %p134 = scmp.ne.s32.totalorder %s129, %s131
      %p135 = scmp.eq.s32.totalorder %s22, 0
      %p136 = por %p134, %p135
      %p137 = scmp.ne.s32.totalorder %s129, %s131
      %p138 = scmp.eq.s32.totalorder %s27, 1
      %p139 = por %p137, %p138
      %p140 = scmp.ne.s32.totalorder %s131, %s132
      %p141 = scmp.eq.s32.totalorder %s27, 0
      %p142 = por %p140, %p141
      %p143 = scmp.ne.s32.totalorder %s131, %s132
      %p144 = scmp.eq.s32.totalorder %s28, 1
      %p145 = por %p143, %p144
      %p147 = scmp.ne.s32.totalorder %s132, %s146
      %p148 = scmp.eq.s32.totalorder %s28, 0
      %p149 = por %p147, %p148
      %s151 = sadd.s32 %s150, 1
      %p154 = scmp.eq.s32.totalorder %s22, 1
      %p155 = scmp.ne.s32.totalorder %s150, %s152
      %p156 = scmp.eq.s32.totalorder %s22, 0
      %p157 = por %p155, %p156
      %p158 = scmp.ne.s32.totalorder %s150, %s152
      %p159 = scmp.eq.s32.totalorder %s27, 1
      %p160 = por %p158, %p159
      %p161 = scmp.ne.s32.totalorder %s152, %s153
      %p162 = scmp.eq.s32.totalorder %s27, 0
      %p163 = por %p161, %p162
      %p164 = scmp.ne.s32.totalorder %s152, %s153
      %p165 = scmp.eq.s32.totalorder %s28, 1
      %p166 = por %p164, %p165
      %p168 = scmp.ne.s32.totalorder %s153, %s167
      %p169 = scmp.eq.s32.totalorder %s28, 0
      %p170 = por %p168, %p169
      %s172 = sadd.s32 %s171, 1
      %p175 = scmp.eq.s32.totalorder %s22, 1
      %p176 = scmp.ne.s32.totalorder %s171, %s173
      %p177 = scmp.eq.s32.totalorder %s22, 0
      %p178 = por %p176, %p177
      %p179 = scmp.ne.s32.totalorder %s171, %s173
      %p180 = scmp.eq.s32.totalorder %s27, 1
      %p181 = por %p179, %p180
      %p182 = scmp.ne.s32.totalorder %s173, %s174
      %p183 = scmp.eq.s32.totalorder %s27, 0
      %p184 = por %p182, %p183
      %p185 = scmp.ne.s32.totalorder %s173, %s174
      %p186 = scmp.eq.s32.totalorder %s28, 1
      %p187 = por %p185, %p186
      %p189 = scmp.ne.s32.totalorder %s174, %s188
      %p190 = scmp.eq.s32.totalorder %s28, 0
      %p191 = por %p189, %p190
      %s193 = sadd.s32 %s192, 1
      %p196 = scmp.eq.s32.totalorder %s22, 1
      %p197 = scmp.ne.s32.totalorder %s192, %s194
      %p198 = scmp.eq.s32.totalorder %s22, 0
      %p199 = por %p197, %p198
      %p200 = scmp.ne.s32.totalorder %s192, %s194
      %p201 = scmp.eq.s32.totalorder %s27, 1
      %p202 = por %p200, %p201
      %p203 = scmp.ne.s32.totalorder %s194, %s195
      %p204 = scmp.eq.s32.totalorder %s27, 0
      %p205 = por %p203, %p204
      %p206 = scmp.ne.s32.totalorder %s194, %s195
      %p207 = scmp.eq.s32.totalorder %s28, 1
      %p208 = por %p206, %p207
      %p210 = scmp.ne.s32.totalorder %s195, %s209
      %p211 = scmp.eq.s32.totalorder %s28, 0
      %p212 = por %p210, %p211
      %s214 = sadd.s32 %s213, 1
      %p217 = scmp.eq.s32.totalorder %s22, 1
      %p218 = scmp.ne.s32.totalorder %s213, %s215
      %p219 = scmp.eq.s32.totalorder %s22, 0
      %p220 = por %p218, %p219
      %p221 = scmp.ne.s32.totalorder %s213, %s215
      %p222 = scmp.eq.s32.totalorder %s27, 1
      %p223 = por %p221, %p222
      %p224 = scmp.ne.s32.totalorder %s215, %s216
      %p225 = scmp.eq.s32.totalorder %s27, 0
      %p226 = por %p224, %p225
      %p227 = scmp.ne.s32.totalorder %s215, %s216
      %p228 = scmp.eq.s32.totalorder %s28, 1
      %p229 = por %p227, %p228
      %p231 = scmp.ne.s32.totalorder %s216, %s230
      %p232 = scmp.eq.s32.totalorder %s28, 0
      %p233 = por %p231, %p232
      %s235 = sadd.s32 %s234, 1
      %p238 = scmp.eq.s32.totalorder %s22, 1
      %p239 = scmp.ne.s32.totalorder %s234, %s236
      %p240 = scmp.eq.s32.totalorder %s22, 0
      %p241 = por %p239, %p240
      %p242 = scmp.ne.s32.totalorder %s234, %s236
      %p243 = scmp.eq.s32.totalorder %s27, 1
      %p244 = por %p242, %p243
      %p245 = scmp.ne.s32.totalorder %s236, %s237
      %p246 = scmp.eq.s32.totalorder %s27, 0
      %p247 = por %p245, %p246
      %p248 = scmp.ne.s32.totalorder %s236, %s237
      %p249 = scmp.eq.s32.totalorder %s28, 1
      %p250 = por %p248, %p249
      %p252 = scmp.ne.s32.totalorder %s237, %s251
      %p253 = scmp.eq.s32.totalorder %s28, 0
      %p254 = por %p252, %p253
      %s256 = sadd.s32 %s255, 1
      %p259 = scmp.eq.s32.totalorder %s22, 1
      %p260 = scmp.ne.s32.totalorder %s255, %s257
      %p261 = scmp.eq.s32.totalorder %s22, 0
      %p262 = por %p260, %p261
      %p263 = scmp.ne.s32.totalorder %s255, %s257
      %p264 = scmp.eq.s32.totalorder %s27, 1
      %p265 = por %p263, %p264
      %p266 = scmp.ne.s32.totalorder %s257, %s258
      %p267 = scmp.eq.s32.totalorder %s27, 0
      %p268 = por %p266, %p267
      %p269 = scmp.ne.s32.totalorder %s257, %s258
      %p270 = scmp.eq.s32.totalorder %s28, 1
      %p271 = por %p269, %p270
      %p273 = scmp.ne.s32.totalorder %s258, %s272
      %p274 = scmp.eq.s32.totalorder %s28, 0
      %p275 = por %p273, %p274
      %s277 = sadd.s32 %s276, 1
      %p280 = scmp.eq.s32.totalorder %s22, 1
      %p281 = scmp.ne.s32.totalorder %s276, %s278
      %p282 = scmp.eq.s32.totalorder %s22, 0
      %p283 = por %p281, %p282
      %p284 = scmp.ne.s32.totalorder %s276, %s278
      %p285 = scmp.eq.s32.totalorder %s27, 1
      %p286 = por %p284, %p285
      %p287 = scmp.ne.s32.totalorder %s278, %s279
      %p288 = scmp.eq.s32.totalorder %s27, 0
      %p289 = por %p287, %p288
      %p290 = scmp.ne.s32.totalorder %s278, %s279
      %p291 = scmp.eq.s32.totalorder %s28, 1
      %p292 = por %p290, %p291
      %p294 = scmp.ne.s32.totalorder %s279, %s293
      %p295 = scmp.eq.s32.totalorder %s28, 0
      %p296 = por %p294, %p295
      %s298 = sadd.s32 %s297, 1
      %p301 = scmp.eq.s32.totalorder %s22, 1
      %p302 = scmp.ne.s32.totalorder %s297, %s299
      %p303 = scmp.eq.s32.totalorder %s22, 0
      %p304 = por %p302, %p303
      %p305 = scmp.ne.s32.totalorder %s297, %s299
      %p306 = scmp.eq.s32.totalorder %s27, 1
      %p307 = por %p305, %p306
      %p308 = scmp.ne.s32.totalorder %s299, %s300
      %p309 = scmp.eq.s32.totalorder %s27, 0
      %p310 = por %p308, %p309
      %p311 = scmp.ne.s32.totalorder %s299, %s300
      %p312 = scmp.eq.s32.totalorder %s28, 1
      %p313 = por %p311, %p312
      %p315 = scmp.ne.s32.totalorder %s300, %s314
      %p316 = scmp.eq.s32.totalorder %s28, 0
      %p317 = por %p315, %p316
      %s318 = ssub.s32 %s22, %s29
      %p319 = scmp.eq.s32.totalorder %s318, 0
      %s321 = sadd.s32 %s320, 1
      %s322 = scalar_select %p319, %s320, %s321
      %p325 = pneg %p319
      %p326 = scmp.eq.s32.totalorder %s22, 1
      %p327 = por %p325, %p326
      %p328 = scmp.ne.s32.totalorder %s320, %s323
      %p329 = scmp.eq.s32.totalorder %s22, 0
      %p330 = por %p328, %p329
      %p331 = scmp.ne.s32.totalorder %s320, %s323
      %p332 = scmp.eq.s32.totalorder %s27, 1
      %p333 = por %p331, %p332
      %p334 = scmp.ne.s32.totalorder %s323, %s324
      %p335 = scmp.eq.s32.totalorder %s27, 0
      %p336 = por %p334, %p335
      %p337 = scmp.ne.s32.totalorder %s323, %s324
      %p338 = scmp.eq.s32.totalorder %s28, 1
      %p339 = por %p337, %p338
      %p341 = scmp.ne.s32.totalorder %s324, %s340
      %p342 = scmp.eq.s32.totalorder %s28, 0
      %p343 = por %p341, %p342
      %p344 = scmp.le.s32.totalorder 1, %s22
      %p345 = scmp.lt.s32.totalorder %s22, 3
      %p346 = pnand %p344, %p345
      %p347 = pneg %p346
      // Predicated region
      $region9: #{tpu_custom_call.1} parent=5 // pred_check
        _
      $region10: #{tpu_custom_call.1} parent=5 // pred_check_branch
        %349 = sbr.rel (%p346) target = $region12
      $region11: #{tpu_custom_call.1} parent=5 // pred_region
        %s350 = ssub.s32 %s22, 1
        // Predicated region
        $region13: #{tpu_custom_call.1} parent=11 // pred_check
          %p351 = pneg %p121
        $region14: #{tpu_custom_call.1} parent=11 // pred_check_branch
          %353 = sbr.rel (%p351) target = $region16
        $region15: #{tpu_custom_call.1} parent=11 // pred_region
          _
        $region16: #{tpu_custom_call.1} parent=11 // pred_fallthru
          _
        // Predicated region
        $region17: #{tpu_custom_call.1} parent=11 // pred_check
          %p354 = pneg %p142
        $region18: #{tpu_custom_call.1} parent=11 // pred_check_branch
          %356 = sbr.rel (%p354) target = $region20
        $region19: #{tpu_custom_call.1} parent=11 // pred_region
          _
        $region20: #{tpu_custom_call.1} parent=11 // pred_fallthru
          _
        // Predicated region
        $region21: #{tpu_custom_call.1} parent=11 // pred_check
          %p357 = pneg %p163
        $region22: #{tpu_custom_call.1} parent=11 // pred_check_branch
          %359 = sbr.rel (%p357) target = $region24
        $region23: #{tpu_custom_call.1} parent=11 // pred_region
          _
        $region24: #{tpu_custom_call.1} parent=11 // pred_fallthru
          _
        // Predicated region
        $region25: #{tpu_custom_call.1} parent=11 // pred_check
          %p360 = pneg %p184
        $region26: #{tpu_custom_call.1} parent=11 // pred_check_branch
          %362 = sbr.rel (%p360) target = $region28
        $region27: #{tpu_custom_call.1} parent=11 // pred_region
          _
        $region28: #{tpu_custom_call.1} parent=11 // pred_fallthru
          _
        // Predicated region
        $region29: #{tpu_custom_call.1} parent=11 // pred_check
          %p363 = pneg %p205
        $region30: #{tpu_custom_call.1} parent=11 // pred_check_branch
          %365 = sbr.rel (%p363) target = $region32
        $region31: #{tpu_custom_call.1} parent=11 // pred_region
          _
        $region32: #{tpu_custom_call.1} parent=11 // pred_fallthru
          _
        // Predicated region
        $region33: #{tpu_custom_call.1} parent=11 // pred_check
          %p366 = pneg %p226
        $region34: #{tpu_custom_call.1} parent=11 // pred_check_branch
          %368 = sbr.rel (%p366) target = $region36
        $region35: #{tpu_custom_call.1} parent=11 // pred_region
          _
        $region36: #{tpu_custom_call.1} parent=11 // pred_fallthru
          _
        // Predicated region
        $region37: #{tpu_custom_call.1} parent=11 // pred_check
          %p369 = pneg %p247
        $region38: #{tpu_custom_call.1} parent=11 // pred_check_branch
          %371 = sbr.rel (%p369) target = $region40
        $region39: #{tpu_custom_call.1} parent=11 // pred_region
          _
        $region40: #{tpu_custom_call.1} parent=11 // pred_fallthru
          _
        // Predicated region
        $region41: #{tpu_custom_call.1} parent=11 // pred_check
          %p372 = pneg %p268
        $region42: #{tpu_custom_call.1} parent=11 // pred_check_branch
          %374 = sbr.rel (%p372) target = $region44
        $region43: #{tpu_custom_call.1} parent=11 // pred_region
          _
        $region44: #{tpu_custom_call.1} parent=11 // pred_fallthru
          _
        // Predicated region
        $region45: #{tpu_custom_call.1} parent=11 // pred_check
          %p375 = pneg %p289
        $region46: #{tpu_custom_call.1} parent=11 // pred_check_branch
          %377 = sbr.rel (%p375) target = $region48
        $region47: #{tpu_custom_call.1} parent=11 // pred_region
          _
        $region48: #{tpu_custom_call.1} parent=11 // pred_fallthru
          _
        // Predicated region
        $region49: #{tpu_custom_call.1} parent=11 // pred_check
          %p378 = pneg %p310
        $region50: #{tpu_custom_call.1} parent=11 // pred_check_branch
          %380 = sbr.rel (%p378) target = $region52
        $region51: #{tpu_custom_call.1} parent=11 // pred_region
          _
        $region52: #{tpu_custom_call.1} parent=11 // pred_fallthru
          _
      $region12: #{tpu_custom_call.1} parent=5 // pred_fallthru
        _
      %p381 = scmp.lt.s32.totalorder %s22, 2
      // Predicated region
      $region53: #{tpu_custom_call.1} parent=5 // pred_check
        %p382 = pneg %p381
      $region54: #{tpu_custom_call.1} parent=5 // pred_check_branch
        %384 = sbr.rel (%p382) target = $region56
      $region55: #{tpu_custom_call.1} parent=5 // pred_region
        // Predicated region
        $region57: #{tpu_custom_call.1} parent=55 // pred_check
          %p385 = pneg %p42
        $region58: #{tpu_custom_call.1} parent=55 // pred_check_branch
          %387 = sbr.rel (%p385) target = $region60
        $region59: #{tpu_custom_call.1} parent=55 // pred_region
          %p388 = scmp.lt.s32.totalorder %s22, 1
          %s389 = scalar_select %p388, %s22, 1
          %s390 = smul.addr %s389, 8
          %s391 = scalar_lea.vmem %s0, %s390
        $region60: #{tpu_custom_call.1} parent=55 // pred_fallthru
          _
        // Predicated region
        $region61: #{tpu_custom_call.1} parent=55 // pred_check
          %p392 = pneg %p68
        $region62: #{tpu_custom_call.1} parent=55 // pred_check_branch
          %394 = sbr.rel (%p392) target = $region64
        $region63: #{tpu_custom_call.1} parent=55 // pred_region
          %p395 = scmp.lt.s32.totalorder %s22, 1
          %s396 = scalar_select %p395, %s22, 1
          %s397 = smul.addr %s396, 8
          %s398 = scalar_lea.vmem %s1, %s397
        $region64: #{tpu_custom_call.1} parent=55 // pred_fallthru
          _
        // Predicated region
        $region65: #{tpu_custom_call.1} parent=55 // pred_check
          %p399 = pneg %p94
        $region66: #{tpu_custom_call.1} parent=55 // pred_check_branch
          %401 = sbr.rel (%p399) target = $region68
        $region67: #{tpu_custom_call.1} parent=55 // pred_region
          %p402 = scmp.lt.s32.totalorder %s22, 1
          %s403 = scalar_select %p402, %s22, 1
          %s404 = smul.addr %s403, 8
          %s405 = scalar_lea.vmem %s2, %s404
        $region68: #{tpu_custom_call.1} parent=55 // pred_fallthru
          _
      $region56: #{tpu_custom_call.1} parent=5 // pred_fallthru
        _
      %p406 = scmp.le.s32.totalorder 1, %s22
      %p407 = scmp.lt.s32.totalorder %s22, 3
      %p408 = pnand %p406, %p407
      %p409 = pneg %p408
      // Predicated region
      $region69: #{tpu_custom_call.1} parent=5 // pred_check
        _
      $region70: #{tpu_custom_call.1} parent=5 // pred_check_branch
        %411 = sbr.rel (%p408) target = $region72
      $region71: #{tpu_custom_call.1} parent=5 // pred_region
        %s412 = ssub.s32 %s22, 1
        %p413 = scmp.lt.s32.totalorder %s27, 1
        %s414 = scalar_select %p413, %s27, 1
        %s415 = smul.addr %s414, 8
        %s416 = scalar_lea.vmem %s0, %s415
        %p417 = pneg %p48
        %p418 = pneg %p45
        %p419 = scmp.lt.s32.totalorder %s27, 1
        %s420 = scalar_select %p419, %s27, 1
        %s421 = smul.addr %s420, 8
        %s422 = scalar_lea.vmem %s1, %s421
        %p423 = pneg %p74
        %p424 = pneg %p71
        %p425 = scmp.lt.s32.totalorder %s27, 1
        %s426 = scalar_select %p425, %s27, 1
        %s427 = smul.addr %s426, 8
        %s428 = scalar_lea.vmem %s2, %s427
        %p429 = pneg %p100
        %p430 = pneg %p97
        %p431 = pneg %p121
        %p432 = pneg %p118
        %p433 = pneg %p142
        %p434 = pneg %p139
        %p435 = pneg %p163
        %p436 = pneg %p160
        %p437 = pneg %p184
        %p438 = pneg %p181
        %p439 = pneg %p205
        %p440 = pneg %p202
        %p441 = pneg %p226
        %p442 = pneg %p223
        %p443 = pneg %p247
        %p444 = pneg %p244
        %p445 = pneg %p268
        %p446 = pneg %p265
        %p447 = pneg %p289
        %p448 = pneg %p286
        %p449 = pneg %p310
        %p450 = pneg %p307
        %p451 = pneg %p336
        %p452 = pneg %p333
        %s453 = sand.u32 %s323, 1
        %s454 = scalar_lea.sflag [#allocation3], %s453
        %s455 = sand.u32 %s323, 1
        %s456 = smul.addr %s455, 8
        %s457 = scalar_lea.vmem [#allocation2], %s456
        %p458 = scmp.lt.s32.totalorder %s27, 1
        %s459 = scalar_select %p458, %s27, 1
        %s460 = smul.addr %s459, 8
        %s461 = scalar_lea.vmem %s0, %s460
        %p462 = scmp.lt.s32.totalorder %s27, 1
        %s463 = scalar_select %p462, %s27, 1
        %s464 = smul.addr %s463, 8
        %s465 = scalar_lea.vmem %s1, %s464
        %p466 = scmp.lt.s32.totalorder %s27, 1
        %s467 = scalar_select %p466, %s27, 1
        %s468 = smul.addr %s467, 8
        %s469 = scalar_lea.vmem %s2, %s468
        %v470 = vld [vmem:[%s461] sm:$0xff]
        %v471 = vld [vmem:[%s465] sm:$0xff]
        %v472 = vld [vmem:[%s469] sm:$0xff]
        %v473 = vld [vmem:[%s3] sm:$0xff]
        %v474 = vld [vmem:[%s3 + $0x8] sm:$0xff]
        %v475 = vld [vmem:[%s3 + $0x10] sm:$0xff]
        %v476 = vld [vmem:[%s3 + $0x18] sm:$0xff]
        %v477 = vld [vmem:[%s3 + $0x20] sm:$0xff]
        %v478 = vld [vmem:[%s3 + $0x28] sm:$0xff]
        %v479 = vld [vmem:[%s3 + $0x30] sm:$0xff]
        %v480 = vld [vmem:[%s3 + $0x38] sm:$0xff]
        %v481 = vld [vmem:[%s3 + $0x40] sm:$0xff]
        %v482 = vld [vmem:[%s3 + $0x48] sm:$0xff]
        %v483 = vld [vmem:[%s3 + $0x50] sm:$0xff]
        %v484 = vld [vmem:[%s3 + $0x58] sm:$0xff]
        %v485 = vld [vmem:[%s3 + $0x60] sm:$0xff]
        %v486 = vld [vmem:[%s3 + $0x68] sm:$0xff]
        %v487 = vld [vmem:[%s3 + $0x70] sm:$0xff]
        %v488 = vld [vmem:[%s3 + $0x78] sm:$0xff]
        %v489 = vld [vmem:[%s4] sm:$0x1]
        %v490 = vld [vmem:[%s4 + $0x1] sm:$0x1]
        %v491 = vld [vmem:[%s4 + $0x2] sm:$0x1]
        %v492 = vld [vmem:[%s4 + $0x3] sm:$0x1]
        %v497 = vlaneseq
        %v498 = vshrl.u32 %v497, 7
        %v499 = vsub.s32 0, %v498
        %v500 = vrot.slane %v489, %v499
        %v501 = vlaneseq
        %v502 = vshrl.u32 %v501, 7
        %v503 = vsub.s32 0, %v502
        %v504 = vrot.slane %v490, %v503
        %v505 = vlaneseq
        %v506 = vshrl.u32 %v505, 7
        %v507 = vsub.s32 0, %v506
        %v508 = vrot.slane %v491, %v507
        %v509 = vlaneseq
        %v510 = vshrl.u32 %v509, 7
        %v511 = vsub.s32 0, %v510
        %v512 = vrot.slane %v492, %v511
        %vm517 = vcmask 261120
        %v519 = vsel %vm517, %v470, 0
        %521 = vmatprep.subr.mxu0 0.0
        %522 = vmatpush1.msra.mxu0 0.0
        %523 = vmatprep.subr.mxu0 0.0
        %524 = vmatpush1.msra.mxu0 0.0
        %525 = vmatprep.subr.mxu0 0.0
        %526 = vmatpush1.msra.mxu0 0.0
        %527 = vmatprep.subr.mxu0 0.0
        %528 = vmatpush1.msra.mxu0 0.0
        %529 = vmatprep.subr.mxu0 0.0
        %530 = vmatpush1.msra.mxu0 0.0
        %531 = vmatprep.subr.mxu0 0.0
        %532 = vmatpush1.msra.mxu0 0.0
        %533 = vmatprep.subr.mxu0 0.0
        %534 = vmatpush1.msra.mxu0 0.0
        %535 = vmatprep.subr.mxu0 0.0
        %536 = vmatpush1.msra.mxu0 0.0
        %537 = vmatprep.subr.mxu0 0.0
        %538 = vmatpush1.msra.mxu0 0.0
        %539 = vmatprep.subr.mxu0 0.0
        %540 = vmatpush1.msra.mxu0 0.0
        %541 = vmatprep.subr.mxu0 0.0
        %542 = vmatpush1.msra.mxu0 0.0
        %543 = vmatprep.subr.mxu0 0.0
        %544 = vmatpush1.msra.mxu0 0.0
        %545 = vmatprep.subr.mxu0 0.0
        %546 = vmatpush1.msra.mxu0 %v476
        %547 = vmatprep.subr.mxu0 0.0
        %548 = vmatpush1.msra.mxu0 %v475
        %549 = vmatprep.subr.mxu0 0.0
        %550 = vmatpush1.msra.mxu0 %v474
        %551 = vmatprep.subr.mxu0 0.0
        %552 = vmatpush1.msra.mxu0 %v473
        %553 = vmatprep.subr.mxu0 0.0
        %554 = vmatpush2.msra.mxu0 0.0
        %555 = vmatprep.subr.mxu0 0.0
        %556 = vmatpush2.msra.mxu0 0.0
        %557 = vmatprep.subr.mxu0 0.0
        %558 = vmatpush2.msra.mxu0 0.0
        %559 = vmatprep.subr.mxu0 0.0
        %560 = vmatpush2.msra.mxu0 0.0
        %561 = vmatprep.subr.mxu0 0.0
        %562 = vmatpush2.msra.mxu0 0.0
        %563 = vmatprep.subr.mxu0 0.0
        %564 = vmatpush2.msra.mxu0 0.0
        %565 = vmatprep.subr.mxu0 0.0
        %566 = vmatpush2.msra.mxu0 0.0
        %567 = vmatprep.subr.mxu0 0.0
        %568 = vmatpush2.msra.mxu0 0.0
        %569 = vmatprep.subr.mxu0 0.0
        %570 = vmatpush2.msra.mxu0 0.0
        %571 = vmatprep.subr.mxu0 0.0
        %572 = vmatpush2.msra.mxu0 0.0
        %573 = vmatprep.subr.mxu0 0.0
        %574 = vmatpush2.msra.mxu0 0.0
        %575 = vmatprep.subr.mxu0 0.0
        %576 = vmatpush2.msra.mxu0 0.0
        %577 = vmatprep.subr.mxu0 0.0
        %578 = vmatpush2.msra.mxu0 0.0
        %579 = vmatprep.subr.mxu0 0.0
        %580 = vmatpush2.msra.mxu0 0.0
        %581 = vmatprep.subr.mxu0 0.0
        %582 = vmatpush2.msra.mxu0 0.0
        %583 = vmatprep.subr.mxu0 0.0
        %584 = vmatpush2.msra.mxu0 0.0
        %585 = vmatprep.mubr.f32.mxu0 0.0
        %586 = vmatmul.mubr.f32.gmra.mxu0 %v519
        %v587 = vpop.f32.mrf.mxu0
        %v588 = vadd.f32 %v500, %v587
        %v589 = vpop.f32.mrf.mxu0
        %590 = vdwg.mxu0
        %591 = vmatprep.subr.mxu0 0.0
        %592 = vmatpush1.msra.mxu0 0.0
        %593 = vmatprep.subr.mxu0 0.0
        %594 = vmatpush1.msra.mxu0 0.0
        %595 = vmatprep.subr.mxu0 0.0
        %596 = vmatpush1.msra.mxu0 0.0
        %597 = vmatprep.subr.mxu0 0.0
        %598 = vmatpush1.msra.mxu0 0.0
        %599 = vmatprep.subr.mxu0 0.0
        %600 = vmatpush1.msra.mxu0 0.0
        %601 = vmatprep.subr.mxu0 0.0
        %602 = vmatpush1.msra.mxu0 0.0
        %603 = vmatprep.subr.mxu0 0.0
        %604 = vmatpush1.msra.mxu0 0.0
        %605 = vmatprep.subr.mxu0 0.0
        %606 = vmatpush1.msra.mxu0 0.0
        %607 = vmatprep.subr.mxu0 0.0
        %608 = vmatpush1.msra.mxu0 0.0
        %609 = vmatprep.subr.mxu0 0.0
        %610 = vmatpush1.msra.mxu0 0.0
        %611 = vmatprep.subr.mxu0 0.0
        %612 = vmatpush1.msra.mxu0 0.0
        %613 = vmatprep.subr.mxu0 0.0
        %614 = vmatpush1.msra.mxu0 0.0
        %615 = vmatprep.subr.mxu0 0.0
        %616 = vmatpush1.msra.mxu0 %v480
        %617 = vmatprep.subr.mxu0 0.0
        %618 = vmatpush1.msra.mxu0 %v479
        %619 = vmatprep.subr.mxu0 0.0
        %620 = vmatpush1.msra.mxu0 %v478
        %621 = vmatprep.subr.mxu0 0.0
        %622 = vmatpush1.msra.mxu0 %v477
        %623 = vmatprep.subr.mxu0 0.0
        %624 = vmatpush2.msra.mxu0 0.0
        %625 = vmatprep.subr.mxu0 0.0
        %626 = vmatpush2.msra.mxu0 0.0
        %627 = vmatprep.subr.mxu0 0.0
        %628 = vmatpush2.msra.mxu0 0.0
        %629 = vmatprep.subr.mxu0 0.0
        %630 = vmatpush2.msra.mxu0 0.0
        %631 = vmatprep.subr.mxu0 0.0
        %632 = vmatpush2.msra.mxu0 0.0
        %633 = vmatprep.subr.mxu0 0.0
        %634 = vmatpush2.msra.mxu0 0.0
        %635 = vmatprep.subr.mxu0 0.0
        %636 = vmatpush2.msra.mxu0 0.0
        %637 = vmatprep.subr.mxu0 0.0
        %638 = vmatpush2.msra.mxu0 0.0
        %639 = vmatprep.subr.mxu0 0.0
        %640 = vmatpush2.msra.mxu0 0.0
        %641 = vmatprep.subr.mxu0 0.0
        %642 = vmatpush2.msra.mxu0 0.0
        %643 = vmatprep.subr.mxu0 0.0
        %644 = vmatpush2.msra.mxu0 0.0
        %645 = vmatprep.subr.mxu0 0.0
        %646 = vmatpush2.msra.mxu0 0.0
        %647 = vmatprep.subr.mxu0 0.0
        %648 = vmatpush2.msra.mxu0 0.0
        %649 = vmatprep.subr.mxu0 0.0
        %650 = vmatpush2.msra.mxu0 0.0
        %651 = vmatprep.subr.mxu0 0.0
        %652 = vmatpush2.msra.mxu0 0.0
        %653 = vmatprep.subr.mxu0 0.0
        %654 = vmatpush2.msra.mxu0 0.0
        %655 = vmatprep.mubr.f32.mxu0 0.0
        %656 = vmatmul.mubr.f32.gmra.mxu0 %v519
        %v657 = vpop.f32.mrf.mxu0
        %v658 = vadd.f32 %v504, %v657
        %v659 = vpop.f32.mrf.mxu0
        %660 = vdwg.mxu0
        %661 = vmatprep.subr.mxu0 0.0
        %662 = vmatpush1.msra.mxu0 0.0
        %663 = vmatprep.subr.mxu0 0.0
        %664 = vmatpush1.msra.mxu0 0.0
        %665 = vmatprep.subr.mxu0 0.0
        %666 = vmatpush1.msra.mxu0 0.0
        %667 = vmatprep.subr.mxu0 0.0
        %668 = vmatpush1.msra.mxu0 0.0
        %669 = vmatprep.subr.mxu0 0.0
        %670 = vmatpush1.msra.mxu0 0.0
        %671 = vmatprep.subr.mxu0 0.0
        %672 = vmatpush1.msra.mxu0 0.0
        %673 = vmatprep.subr.mxu0 0.0
        %674 = vmatpush1.msra.mxu0 0.0
        %675 = vmatprep.subr.mxu0 0.0
        %676 = vmatpush1.msra.mxu0 0.0
        %677 = vmatprep.subr.mxu0 0.0
        %678 = vmatpush1.msra.mxu0 0.0
        %679 = vmatprep.subr.mxu0 0.0
        %680 = vmatpush1.msra.mxu0 0.0
        %681 = vmatprep.subr.mxu0 0.0
        %682 = vmatpush1.msra.mxu0 0.0
        %683 = vmatprep.subr.mxu0 0.0
        %684 = vmatpush1.msra.mxu0 0.0
        %685 = vmatprep.subr.mxu0 0.0
        %686 = vmatpush1.msra.mxu0 %v484
        %687 = vmatprep.subr.mxu0 0.0
        %688 = vmatpush1.msra.mxu0 %v483
        %689 = vmatprep.subr.mxu0 0.0
        %690 = vmatpush1.msra.mxu0 %v482
        %691 = vmatprep.subr.mxu0 0.0
        %692 = vmatpush1.msra.mxu0 %v481
        %693 = vmatprep.subr.mxu0 0.0
        %694 = vmatpush2.msra.mxu0 0.0
        %695 = vmatprep.subr.mxu0 0.0
        %696 = vmatpush2.msra.mxu0 0.0
        %697 = vmatprep.subr.mxu0 0.0
        %698 = vmatpush2.msra.mxu0 0.0
        %699 = vmatprep.subr.mxu0 0.0
        %700 = vmatpush2.msra.mxu0 0.0
        %701 = vmatprep.subr.mxu0 0.0
        %702 = vmatpush2.msra.mxu0 0.0
        %703 = vmatprep.subr.mxu0 0.0
        %704 = vmatpush2.msra.mxu0 0.0
        %705 = vmatprep.subr.mxu0 0.0
        %706 = vmatpush2.msra.mxu0 0.0
        %707 = vmatprep.subr.mxu0 0.0
        %708 = vmatpush2.msra.mxu0 0.0
        %709 = vmatprep.subr.mxu0 0.0
        %710 = vmatpush2.msra.mxu0 0.0
        %711 = vmatprep.subr.mxu0 0.0
        %712 = vmatpush2.msra.mxu0 0.0
        %713 = vmatprep.subr.mxu0 0.0
        %714 = vmatpush2.msra.mxu0 0.0
        %715 = vmatprep.subr.mxu0 0.0
        %716 = vmatpush2.msra.mxu0 0.0
        %717 = vmatprep.subr.mxu0 0.0
        %718 = vmatpush2.msra.mxu0 0.0
        %719 = vmatprep.subr.mxu0 0.0
        %720 = vmatpush2.msra.mxu0 0.0
        %721 = vmatprep.subr.mxu0 0.0
        %722 = vmatpush2.msra.mxu0 0.0
        %723 = vmatprep.subr.mxu0 0.0
        %724 = vmatpush2.msra.mxu0 0.0
        %725 = vmatprep.mubr.f32.mxu0 0.0
        %726 = vmatmul.mubr.f32.gmra.mxu0 %v519
        %v727 = vpop.f32.mrf.mxu0
        %v728 = vadd.f32 %v508, %v727
        %v729 = vpop.f32.mrf.mxu0
        %730 = vdwg.mxu0
        %731 = vmatprep.subr.mxu0 0.0
        %732 = vmatpush1.msra.mxu0 0.0
        %733 = vmatprep.subr.mxu0 0.0
        %734 = vmatpush1.msra.mxu0 0.0
        %735 = vmatprep.subr.mxu0 0.0
        %736 = vmatpush1.msra.mxu0 0.0
        %737 = vmatprep.subr.mxu0 0.0
        %738 = vmatpush1.msra.mxu0 0.0
        %739 = vmatprep.subr.mxu0 0.0
        %740 = vmatpush1.msra.mxu0 0.0
        %741 = vmatprep.subr.mxu0 0.0
        %742 = vmatpush1.msra.mxu0 0.0
        %743 = vmatprep.subr.mxu0 0.0
        %744 = vmatpush1.msra.mxu0 0.0
        %745 = vmatprep.subr.mxu0 0.0
        %746 = vmatpush1.msra.mxu0 0.0
        %747 = vmatprep.subr.mxu0 0.0
        %748 = vmatpush1.msra.mxu0 0.0
        %749 = vmatprep.subr.mxu0 0.0
        %750 = vmatpush1.msra.mxu0 0.0
        %751 = vmatprep.subr.mxu0 0.0
        %752 = vmatpush1.msra.mxu0 0.0
        %753 = vmatprep.subr.mxu0 0.0
        %754 = vmatpush1.msra.mxu0 0.0
        %755 = vmatprep.subr.mxu0 0.0
        %756 = vmatpush1.msra.mxu0 %v488
        %757 = vmatprep.subr.mxu0 0.0
        %758 = vmatpush1.msra.mxu0 %v487
        %759 = vmatprep.subr.mxu0 0.0
        %760 = vmatpush1.msra.mxu0 %v486
        %761 = vmatprep.subr.mxu0 0.0
        %762 = vmatpush1.msra.mxu0 %v485
        %763 = vmatprep.subr.mxu0 0.0
        %764 = vmatpush2.msra.mxu0 0.0
        %765 = vmatprep.subr.mxu0 0.0
        %766 = vmatpush2.msra.mxu0 0.0
        %767 = vmatprep.subr.mxu0 0.0
        %768 = vmatpush2.msra.mxu0 0.0
        %769 = vmatprep.subr.mxu0 0.0
        %770 = vmatpush2.msra.mxu0 0.0
        %771 = vmatprep.subr.mxu0 0.0
        %772 = vmatpush2.msra.mxu0 0.0
        %773 = vmatprep.subr.mxu0 0.0
        %774 = vmatpush2.msra.mxu0 0.0
        %775 = vmatprep.subr.mxu0 0.0
        %776 = vmatpush2.msra.mxu0 0.0
        %777 = vmatprep.subr.mxu0 0.0
        %778 = vmatpush2.msra.mxu0 0.0
        %779 = vmatprep.subr.mxu0 0.0
        %780 = vmatpush2.msra.mxu0 0.0
        %781 = vmatprep.subr.mxu0 0.0
        %782 = vmatpush2.msra.mxu0 0.0
        %783 = vmatprep.subr.mxu0 0.0
        %784 = vmatpush2.msra.mxu0 0.0
        %785 = vmatprep.subr.mxu0 0.0
        %786 = vmatpush2.msra.mxu0 0.0
        %787 = vmatprep.subr.mxu0 0.0
        %788 = vmatpush2.msra.mxu0 0.0
        %789 = vmatprep.subr.mxu0 0.0
        %790 = vmatpush2.msra.mxu0 0.0
        %791 = vmatprep.subr.mxu0 0.0
        %792 = vmatpush2.msra.mxu0 0.0
        %793 = vmatprep.subr.mxu0 0.0
        %794 = vmatpush2.msra.mxu0 0.0
        %795 = vmatprep.mubr.f32.mxu0 0.0
        %796 = vmatmul.mubr.f32.gmra.mxu0 %v519
        %v797 = vpop.f32.mrf.mxu0
        %v798 = vadd.f32 %v512, %v797
        %v799 = vpop.f32.mrf.mxu0
        %800 = vdwg.mxu0
        %v801 = vld [vmem:[%s5] sm:$0xff]
        %v802 = vld [vmem:[%s5 + $0x8] sm:$0xff]
        %v803 = vld [vmem:[%s5 + $0x10] sm:$0xff]
        %v804 = vld [vmem:[%s5 + $0x18] sm:$0xff]
        %v805 = vld [vmem:[%s5 + $0x20] sm:$0xff]
        %v806 = vld [vmem:[%s5 + $0x28] sm:$0xff]
        %v807 = vld [vmem:[%s5 + $0x30] sm:$0xff]
        %v808 = vld [vmem:[%s5 + $0x38] sm:$0xff]
        %v809 = vld [vmem:[%s5 + $0x40] sm:$0xff]
        %v810 = vld [vmem:[%s5 + $0x48] sm:$0xff]
        %v811 = vld [vmem:[%s5 + $0x50] sm:$0xff]
        %v812 = vld [vmem:[%s5 + $0x58] sm:$0xff]
        %v813 = vld [vmem:[%s5 + $0x60] sm:$0xff]
        %v814 = vld [vmem:[%s5 + $0x68] sm:$0xff]
        %v815 = vld [vmem:[%s5 + $0x70] sm:$0xff]
        %v816 = vld [vmem:[%s5 + $0x78] sm:$0xff]
        %v817 = vld [vmem:[%s6] sm:$0x1]
        %v818 = vld [vmem:[%s6 + $0x1] sm:$0x1]
        %v819 = vld [vmem:[%s6 + $0x2] sm:$0x1]
        %v820 = vld [vmem:[%s6 + $0x3] sm:$0x1]
        %v825 = vlaneseq
        %v826 = vshrl.u32 %v825, 7
        %v827 = vsub.s32 0, %v826
        %v828 = vrot.slane %v817, %v827
        %v829 = vlaneseq
        %v830 = vshrl.u32 %v829, 7
        %v831 = vsub.s32 0, %v830
        %v832 = vrot.slane %v818, %v831
        %v833 = vlaneseq
        %v834 = vshrl.u32 %v833, 7
        %v835 = vsub.s32 0, %v834
        %v836 = vrot.slane %v819, %v835
        %v837 = vlaneseq
        %v838 = vshrl.u32 %v837, 7
        %v839 = vsub.s32 0, %v838
        %v840 = vrot.slane %v820, %v839
        %v846 = vsel %vm517, %v471, 0
        %848 = vmatprep.subr.mxu0 0.0
        %849 = vmatpush1.msra.mxu0 0.0
        %850 = vmatprep.subr.mxu0 0.0
        %851 = vmatpush1.msra.mxu0 0.0
        %852 = vmatprep.subr.mxu0 0.0
        %853 = vmatpush1.msra.mxu0 0.0
        %854 = vmatprep.subr.mxu0 0.0
        %855 = vmatpush1.msra.mxu0 0.0
        %856 = vmatprep.subr.mxu0 0.0
        %857 = vmatpush1.msra.mxu0 0.0
        %858 = vmatprep.subr.mxu0 0.0
        %859 = vmatpush1.msra.mxu0 0.0
        %860 = vmatprep.subr.mxu0 0.0
        %861 = vmatpush1.msra.mxu0 0.0
        %862 = vmatprep.subr.mxu0 0.0
        %863 = vmatpush1.msra.mxu0 0.0
        %864 = vmatprep.subr.mxu0 0.0
        %865 = vmatpush1.msra.mxu0 0.0
        %866 = vmatprep.subr.mxu0 0.0
        %867 = vmatpush1.msra.mxu0 0.0
        %868 = vmatprep.subr.mxu0 0.0
        %869 = vmatpush1.msra.mxu0 0.0
        %870 = vmatprep.subr.mxu0 0.0
        %871 = vmatpush1.msra.mxu0 0.0
        %872 = vmatprep.subr.mxu0 0.0
        %873 = vmatpush1.msra.mxu0 %v804
        %874 = vmatprep.subr.mxu0 0.0
        %875 = vmatpush1.msra.mxu0 %v803
        %876 = vmatprep.subr.mxu0 0.0
        %877 = vmatpush1.msra.mxu0 %v802
        %878 = vmatprep.subr.mxu0 0.0
        %879 = vmatpush1.msra.mxu0 %v801
        %880 = vmatprep.subr.mxu0 0.0
        %881 = vmatpush2.msra.mxu0 0.0
        %882 = vmatprep.subr.mxu0 0.0
        %883 = vmatpush2.msra.mxu0 0.0
        %884 = vmatprep.subr.mxu0 0.0
        %885 = vmatpush2.msra.mxu0 0.0
        %886 = vmatprep.subr.mxu0 0.0
        %887 = vmatpush2.msra.mxu0 0.0
        %888 = vmatprep.subr.mxu0 0.0
        %889 = vmatpush2.msra.mxu0 0.0
        %890 = vmatprep.subr.mxu0 0.0
        %891 = vmatpush2.msra.mxu0 0.0
        %892 = vmatprep.subr.mxu0 0.0
        %893 = vmatpush2.msra.mxu0 0.0
        %894 = vmatprep.subr.mxu0 0.0
        %895 = vmatpush2.msra.mxu0 0.0
        %896 = vmatprep.subr.mxu0 0.0
        %897 = vmatpush2.msra.mxu0 0.0
        %898 = vmatprep.subr.mxu0 0.0
        %899 = vmatpush2.msra.mxu0 0.0
        %900 = vmatprep.subr.mxu0 0.0
        %901 = vmatpush2.msra.mxu0 0.0
        %902 = vmatprep.subr.mxu0 0.0
        %903 = vmatpush2.msra.mxu0 0.0
        %904 = vmatprep.subr.mxu0 0.0
        %905 = vmatpush2.msra.mxu0 0.0
        %906 = vmatprep.subr.mxu0 0.0
        %907 = vmatpush2.msra.mxu0 0.0
        %908 = vmatprep.subr.mxu0 0.0
        %909 = vmatpush2.msra.mxu0 0.0
        %910 = vmatprep.subr.mxu0 0.0
        %911 = vmatpush2.msra.mxu0 0.0
        %912 = vmatprep.mubr.f32.mxu0 0.0
        %913 = vmatmul.mubr.f32.gmra.mxu0 %v846
        %v914 = vpop.f32.mrf.mxu0
        %v915 = vadd.f32 %v828, %v914
        %v916 = vpop.f32.mrf.mxu0
        %917 = vdwg.mxu0
        %918 = vmatprep.subr.mxu0 0.0
        %919 = vmatpush1.msra.mxu0 0.0
        %920 = vmatprep.subr.mxu0 0.0
        %921 = vmatpush1.msra.mxu0 0.0
        %922 = vmatprep.subr.mxu0 0.0
        %923 = vmatpush1.msra.mxu0 0.0
        %924 = vmatprep.subr.mxu0 0.0
        %925 = vmatpush1.msra.mxu0 0.0
        %926 = vmatprep.subr.mxu0 0.0
        %927 = vmatpush1.msra.mxu0 0.0
        %928 = vmatprep.subr.mxu0 0.0
        %929 = vmatpush1.msra.mxu0 0.0
        %930 = vmatprep.subr.mxu0 0.0
        %931 = vmatpush1.msra.mxu0 0.0
        %932 = vmatprep.subr.mxu0 0.0
        %933 = vmatpush1.msra.mxu0 0.0
        %934 = vmatprep.subr.mxu0 0.0
        %935 = vmatpush1.msra.mxu0 0.0
        %936 = vmatprep.subr.mxu0 0.0
        %937 = vmatpush1.msra.mxu0 0.0
        %938 = vmatprep.subr.mxu0 0.0
        %939 = vmatpush1.msra.mxu0 0.0
        %940 = vmatprep.subr.mxu0 0.0
        %941 = vmatpush1.msra.mxu0 0.0
        %942 = vmatprep.subr.mxu0 0.0
        %943 = vmatpush1.msra.mxu0 %v808
        %944 = vmatprep.subr.mxu0 0.0
        %945 = vmatpush1.msra.mxu0 %v807
        %946 = vmatprep.subr.mxu0 0.0
        %947 = vmatpush1.msra.mxu0 %v806
        %948 = vmatprep.subr.mxu0 0.0
        %949 = vmatpush1.msra.mxu0 %v805
        %950 = vmatprep.subr.mxu0 0.0
        %951 = vmatpush2.msra.mxu0 0.0
        %952 = vmatprep.subr.mxu0 0.0
        %953 = vmatpush2.msra.mxu0 0.0
        %954 = vmatprep.subr.mxu0 0.0
        %955 = vmatpush2.msra.mxu0 0.0
        %956 = vmatprep.subr.mxu0 0.0
        %957 = vmatpush2.msra.mxu0 0.0
        %958 = vmatprep.subr.mxu0 0.0
        %959 = vmatpush2.msra.mxu0 0.0
        %960 = vmatprep.subr.mxu0 0.0
        %961 = vmatpush2.msra.mxu0 0.0
        %962 = vmatprep.subr.mxu0 0.0
        %963 = vmatpush2.msra.mxu0 0.0
        %964 = vmatprep.subr.mxu0 0.0
        %965 = vmatpush2.msra.mxu0 0.0
        %966 = vmatprep.subr.mxu0 0.0
        %967 = vmatpush2.msra.mxu0 0.0
        %968 = vmatprep.subr.mxu0 0.0
        %969 = vmatpush2.msra.mxu0 0.0
        %970 = vmatprep.subr.mxu0 0.0
        %971 = vmatpush2.msra.mxu0 0.0
        %972 = vmatprep.subr.mxu0 0.0
        %973 = vmatpush2.msra.mxu0 0.0
        %974 = vmatprep.subr.mxu0 0.0
        %975 = vmatpush2.msra.mxu0 0.0
        %976 = vmatprep.subr.mxu0 0.0
        %977 = vmatpush2.msra.mxu0 0.0
        %978 = vmatprep.subr.mxu0 0.0
        %979 = vmatpush2.msra.mxu0 0.0
        %980 = vmatprep.subr.mxu0 0.0
        %981 = vmatpush2.msra.mxu0 0.0
        %982 = vmatprep.mubr.f32.mxu0 0.0
        %983 = vmatmul.mubr.f32.gmra.mxu0 %v846
        %v984 = vpop.f32.mrf.mxu0
        %v985 = vadd.f32 %v832, %v984
        %v986 = vpop.f32.mrf.mxu0
        %987 = vdwg.mxu0
        %988 = vmatprep.subr.mxu0 0.0
        %989 = vmatpush1.msra.mxu0 0.0
        %990 = vmatprep.subr.mxu0 0.0
        %991 = vmatpush1.msra.mxu0 0.0
        %992 = vmatprep.subr.mxu0 0.0
        %993 = vmatpush1.msra.mxu0 0.0
        %994 = vmatprep.subr.mxu0 0.0
        %995 = vmatpush1.msra.mxu0 0.0
        %996 = vmatprep.subr.mxu0 0.0
        %997 = vmatpush1.msra.mxu0 0.0
        %998 = vmatprep.subr.mxu0 0.0
        %999 = vmatpush1.msra.mxu0 0.0
        %1000 = vmatprep.subr.mxu0 0.0
        %1001 = vmatpush1.msra.mxu0 0.0
        %1002 = vmatprep.subr.mxu0 0.0
        %1003 = vmatpush1.msra.mxu0 0.0
        %1004 = vmatprep.subr.mxu0 0.0
        %1005 = vmatpush1.msra.mxu0 0.0
        %1006 = vmatprep.subr.mxu0 0.0
        %1007 = vmatpush1.msra.mxu0 0.0
        %1008 = vmatprep.subr.mxu0 0.0
        %1009 = vmatpush1.msra.mxu0 0.0
        %1010 = vmatprep.subr.mxu0 0.0
        %1011 = vmatpush1.msra.mxu0 0.0
        %1012 = vmatprep.subr.mxu0 0.0
        %1013 = vmatpush1.msra.mxu0 %v812
        %1014 = vmatprep.subr.mxu0 0.0
        %1015 = vmatpush1.msra.mxu0 %v811
        %1016 = vmatprep.subr.mxu0 0.0
        %1017 = vmatpush1.msra.mxu0 %v810
        %1018 = vmatprep.subr.mxu0 0.0
        %1019 = vmatpush1.msra.mxu0 %v809
        %1020 = vmatprep.subr.mxu0 0.0
        %1021 = vmatpush2.msra.mxu0 0.0
        %1022 = vmatprep.subr.mxu0 0.0
        %1023 = vmatpush2.msra.mxu0 0.0
        %1024 = vmatprep.subr.mxu0 0.0
        %1025 = vmatpush2.msra.mxu0 0.0
        %1026 = vmatprep.subr.mxu0 0.0
        %1027 = vmatpush2.msra.mxu0 0.0
        %1028 = vmatprep.subr.mxu0 0.0
        %1029 = vmatpush2.msra.mxu0 0.0
        %1030 = vmatprep.subr.mxu0 0.0
        %1031 = vmatpush2.msra.mxu0 0.0
        %1032 = vmatprep.subr.mxu0 0.0
        %1033 = vmatpush2.msra.mxu0 0.0
        %1034 = vmatprep.subr.mxu0 0.0
        %1035 = vmatpush2.msra.mxu0 0.0
        %1036 = vmatprep.subr.mxu0 0.0
        %1037 = vmatpush2.msra.mxu0 0.0
        %1038 = vmatprep.subr.mxu0 0.0
        %1039 = vmatpush2.msra.mxu0 0.0
        %1040 = vmatprep.subr.mxu0 0.0
        %1041 = vmatpush2.msra.mxu0 0.0
        %1042 = vmatprep.subr.mxu0 0.0
        %1043 = vmatpush2.msra.mxu0 0.0
        %1044 = vmatprep.subr.mxu0 0.0
        %1045 = vmatpush2.msra.mxu0 0.0
        %1046 = vmatprep.subr.mxu0 0.0
        %1047 = vmatpush2.msra.mxu0 0.0
        %1048 = vmatprep.subr.mxu0 0.0
        %1049 = vmatpush2.msra.mxu0 0.0
        %1050 = vmatprep.subr.mxu0 0.0
        %1051 = vmatpush2.msra.mxu0 0.0
        %1052 = vmatprep.mubr.f32.mxu0 0.0
        %1053 = vmatmul.mubr.f32.gmra.mxu0 %v846
        %v1054 = vpop.f32.mrf.mxu0
        %v1055 = vadd.f32 %v836, %v1054
        %v1056 = vpop.f32.mrf.mxu0
        %1057 = vdwg.mxu0
        %1058 = vmatprep.subr.mxu0 0.0
        %1059 = vmatpush1.msra.mxu0 0.0
        %1060 = vmatprep.subr.mxu0 0.0
        %1061 = vmatpush1.msra.mxu0 0.0
        %1062 = vmatprep.subr.mxu0 0.0
        %1063 = vmatpush1.msra.mxu0 0.0
        %1064 = vmatprep.subr.mxu0 0.0
        %1065 = vmatpush1.msra.mxu0 0.0
        %1066 = vmatprep.subr.mxu0 0.0
        %1067 = vmatpush1.msra.mxu0 0.0
        %1068 = vmatprep.subr.mxu0 0.0
        %1069 = vmatpush1.msra.mxu0 0.0
        %1070 = vmatprep.subr.mxu0 0.0
        %1071 = vmatpush1.msra.mxu0 0.0
        %1072 = vmatprep.subr.mxu0 0.0
        %1073 = vmatpush1.msra.mxu0 0.0
        %1074 = vmatprep.subr.mxu0 0.0
        %1075 = vmatpush1.msra.mxu0 0.0
        %1076 = vmatprep.subr.mxu0 0.0
        %1077 = vmatpush1.msra.mxu0 0.0
        %1078 = vmatprep.subr.mxu0 0.0
        %1079 = vmatpush1.msra.mxu0 0.0
        %1080 = vmatprep.subr.mxu0 0.0
        %1081 = vmatpush1.msra.mxu0 0.0
        %1082 = vmatprep.subr.mxu0 0.0
        %1083 = vmatpush1.msra.mxu0 %v816
        %1084 = vmatprep.subr.mxu0 0.0
        %1085 = vmatpush1.msra.mxu0 %v815
        %1086 = vmatprep.subr.mxu0 0.0
        %1087 = vmatpush1.msra.mxu0 %v814
        %1088 = vmatprep.subr.mxu0 0.0
        %1089 = vmatpush1.msra.mxu0 %v813
        %1090 = vmatprep.subr.mxu0 0.0
        %1091 = vmatpush2.msra.mxu0 0.0
        %1092 = vmatprep.subr.mxu0 0.0
        %1093 = vmatpush2.msra.mxu0 0.0
        %1094 = vmatprep.subr.mxu0 0.0
        %1095 = vmatpush2.msra.mxu0 0.0
        %1096 = vmatprep.subr.mxu0 0.0
        %1097 = vmatpush2.msra.mxu0 0.0
        %1098 = vmatprep.subr.mxu0 0.0
        %1099 = vmatpush2.msra.mxu0 0.0
        %1100 = vmatprep.subr.mxu0 0.0
        %1101 = vmatpush2.msra.mxu0 0.0
        %1102 = vmatprep.subr.mxu0 0.0
        %1103 = vmatpush2.msra.mxu0 0.0
        %1104 = vmatprep.subr.mxu0 0.0
        %1105 = vmatpush2.msra.mxu0 0.0
        %1106 = vmatprep.subr.mxu0 0.0
        %1107 = vmatpush2.msra.mxu0 0.0
        %1108 = vmatprep.subr.mxu0 0.0
        %1109 = vmatpush2.msra.mxu0 0.0
        %1110 = vmatprep.subr.mxu0 0.0
        %1111 = vmatpush2.msra.mxu0 0.0
        %1112 = vmatprep.subr.mxu0 0.0
        %1113 = vmatpush2.msra.mxu0 0.0
        %1114 = vmatprep.subr.mxu0 0.0
        %1115 = vmatpush2.msra.mxu0 0.0
        %1116 = vmatprep.subr.mxu0 0.0
        %1117 = vmatpush2.msra.mxu0 0.0
        %1118 = vmatprep.subr.mxu0 0.0
        %1119 = vmatpush2.msra.mxu0 0.0
        %1120 = vmatprep.subr.mxu0 0.0
        %1121 = vmatpush2.msra.mxu0 0.0
        %1122 = vmatprep.mubr.f32.mxu0 0.0
        %1123 = vmatmul.mubr.f32.gmra.mxu0 %v846
        %v1124 = vpop.f32.mrf.mxu0
        %v1125 = vadd.f32 %v840, %v1124
        %v1126 = vpop.f32.mrf.mxu0
        %1127 = vdwg.mxu0
        %v1128 = vld [vmem:[%s7] sm:$0xff]
        %v1129 = vld [vmem:[%s7 + $0x8] sm:$0xff]
        %v1130 = vld [vmem:[%s7 + $0x10] sm:$0xff]
        %v1131 = vld [vmem:[%s7 + $0x18] sm:$0xff]
        %v1132 = vld [vmem:[%s7 + $0x20] sm:$0xff]
        %v1133 = vld [vmem:[%s7 + $0x28] sm:$0xff]
        %v1134 = vld [vmem:[%s7 + $0x30] sm:$0xff]
        %v1135 = vld [vmem:[%s7 + $0x38] sm:$0xff]
        %v1136 = vld [vmem:[%s7 + $0x40] sm:$0xff]
        %v1137 = vld [vmem:[%s7 + $0x48] sm:$0xff]
        %v1138 = vld [vmem:[%s7 + $0x50] sm:$0xff]
        %v1139 = vld [vmem:[%s7 + $0x58] sm:$0xff]
        %v1140 = vld [vmem:[%s7 + $0x60] sm:$0xff]
        %v1141 = vld [vmem:[%s7 + $0x68] sm:$0xff]
        %v1142 = vld [vmem:[%s7 + $0x70] sm:$0xff]
        %v1143 = vld [vmem:[%s7 + $0x78] sm:$0xff]
        %v1144 = vld [vmem:[%s8] sm:$0x1]
        %v1145 = vld [vmem:[%s8 + $0x1] sm:$0x1]
        %v1146 = vld [vmem:[%s8 + $0x2] sm:$0x1]
        %v1147 = vld [vmem:[%s8 + $0x3] sm:$0x1]
        %v1152 = vlaneseq
        %v1153 = vshrl.u32 %v1152, 7
        %v1154 = vsub.s32 0, %v1153
        %v1155 = vrot.slane %v1144, %v1154
        %v1156 = vlaneseq
        %v1157 = vshrl.u32 %v1156, 7
        %v1158 = vsub.s32 0, %v1157
        %v1159 = vrot.slane %v1145, %v1158
        %v1160 = vlaneseq
        %v1161 = vshrl.u32 %v1160, 7
        %v1162 = vsub.s32 0, %v1161
        %v1163 = vrot.slane %v1146, %v1162
        %v1164 = vlaneseq
        %v1165 = vshrl.u32 %v1164, 7
        %v1166 = vsub.s32 0, %v1165
        %v1167 = vrot.slane %v1147, %v1166
        %v1173 = vsel %vm517, %v472, 0
        %1175 = vmatprep.subr.mxu0 0.0
        %1176 = vmatpush1.msra.mxu0 0.0
        %1177 = vmatprep.subr.mxu0 0.0
        %1178 = vmatpush1.msra.mxu0 0.0
        %1179 = vmatprep.subr.mxu0 0.0
        %1180 = vmatpush1.msra.mxu0 0.0
        %1181 = vmatprep.subr.mxu0 0.0
        %1182 = vmatpush1.msra.mxu0 0.0
        %1183 = vmatprep.subr.mxu0 0.0
        %1184 = vmatpush1.msra.mxu0 0.0
        %1185 = vmatprep.subr.mxu0 0.0
        %1186 = vmatpush1.msra.mxu0 0.0
        %1187 = vmatprep.subr.mxu0 0.0
        %1188 = vmatpush1.msra.mxu0 0.0
        %1189 = vmatprep.subr.mxu0 0.0
        %1190 = vmatpush1.msra.mxu0 0.0
        %1191 = vmatprep.subr.mxu0 0.0
        %1192 = vmatpush1.msra.mxu0 0.0
        %1193 = vmatprep.subr.mxu0 0.0
        %1194 = vmatpush1.msra.mxu0 0.0
        %1195 = vmatprep.subr.mxu0 0.0
        %1196 = vmatpush1.msra.mxu0 0.0
        %1197 = vmatprep.subr.mxu0 0.0
        %1198 = vmatpush1.msra.mxu0 0.0
        %1199 = vmatprep.subr.mxu0 0.0
        %1200 = vmatpush1.msra.mxu0 %v1131
        %1201 = vmatprep.subr.mxu0 0.0
        %1202 = vmatpush1.msra.mxu0 %v1130
        %1203 = vmatprep.subr.mxu0 0.0
        %1204 = vmatpush1.msra.mxu0 %v1129
        %1205 = vmatprep.subr.mxu0 0.0
        %1206 = vmatpush1.msra.mxu0 %v1128
        %1207 = vmatprep.subr.mxu0 0.0
        %1208 = vmatpush2.msra.mxu0 0.0
        %1209 = vmatprep.subr.mxu0 0.0
        %1210 = vmatpush2.msra.mxu0 0.0
        %1211 = vmatprep.subr.mxu0 0.0
        %1212 = vmatpush2.msra.mxu0 0.0
        %1213 = vmatprep.subr.mxu0 0.0
        %1214 = vmatpush2.msra.mxu0 0.0
        %1215 = vmatprep.subr.mxu0 0.0
        %1216 = vmatpush2.msra.mxu0 0.0
        %1217 = vmatprep.subr.mxu0 0.0
        %1218 = vmatpush2.msra.mxu0 0.0
        %1219 = vmatprep.subr.mxu0 0.0
        %1220 = vmatpush2.msra.mxu0 0.0
        %1221 = vmatprep.subr.mxu0 0.0
        %1222 = vmatpush2.msra.mxu0 0.0
        %1223 = vmatprep.subr.mxu0 0.0
        %1224 = vmatpush2.msra.mxu0 0.0
        %1225 = vmatprep.subr.mxu0 0.0
        %1226 = vmatpush2.msra.mxu0 0.0
        %1227 = vmatprep.subr.mxu0 0.0
        %1228 = vmatpush2.msra.mxu0 0.0
        %1229 = vmatprep.subr.mxu0 0.0
        %1230 = vmatpush2.msra.mxu0 0.0
        %1231 = vmatprep.subr.mxu0 0.0
        %1232 = vmatpush2.msra.mxu0 0.0
        %1233 = vmatprep.subr.mxu0 0.0
        %1234 = vmatpush2.msra.mxu0 0.0
        %1235 = vmatprep.subr.mxu0 0.0
        %1236 = vmatpush2.msra.mxu0 0.0
        %1237 = vmatprep.subr.mxu0 0.0
        %1238 = vmatpush2.msra.mxu0 0.0
        %1239 = vmatprep.mubr.f32.mxu0 0.0
        %1240 = vmatmul.mubr.f32.gmra.mxu0 %v1173
        %v1241 = vpop.f32.mrf.mxu0
        %v1242 = vadd.f32 %v1155, %v1241
        %v1243 = vpop.f32.mrf.mxu0
        %1244 = vdwg.mxu0
        %1245 = vmatprep.subr.mxu0 0.0
        %1246 = vmatpush1.msra.mxu0 0.0
        %1247 = vmatprep.subr.mxu0 0.0
        %1248 = vmatpush1.msra.mxu0 0.0
        %1249 = vmatprep.subr.mxu0 0.0
        %1250 = vmatpush1.msra.mxu0 0.0
        %1251 = vmatprep.subr.mxu0 0.0
        %1252 = vmatpush1.msra.mxu0 0.0
        %1253 = vmatprep.subr.mxu0 0.0
        %1254 = vmatpush1.msra.mxu0 0.0
        %1255 = vmatprep.subr.mxu0 0.0
        %1256 = vmatpush1.msra.mxu0 0.0
        %1257 = vmatprep.subr.mxu0 0.0
        %1258 = vmatpush1.msra.mxu0 0.0
        %1259 = vmatprep.subr.mxu0 0.0
        %1260 = vmatpush1.msra.mxu0 0.0
        %1261 = vmatprep.subr.mxu0 0.0
        %1262 = vmatpush1.msra.mxu0 0.0
        %1263 = vmatprep.subr.mxu0 0.0
        %1264 = vmatpush1.msra.mxu0 0.0
        %1265 = vmatprep.subr.mxu0 0.0
        %1266 = vmatpush1.msra.mxu0 0.0
        %1267 = vmatprep.subr.mxu0 0.0
        %1268 = vmatpush1.msra.mxu0 0.0
        %1269 = vmatprep.subr.mxu0 0.0
        %1270 = vmatpush1.msra.mxu0 %v1135
        %1271 = vmatprep.subr.mxu0 0.0
        %1272 = vmatpush1.msra.mxu0 %v1134
        %1273 = vmatprep.subr.mxu0 0.0
        %1274 = vmatpush1.msra.mxu0 %v1133
        %1275 = vmatprep.subr.mxu0 0.0
        %1276 = vmatpush1.msra.mxu0 %v1132
        %1277 = vmatprep.subr.mxu0 0.0
        %1278 = vmatpush2.msra.mxu0 0.0
        %1279 = vmatprep.subr.mxu0 0.0
        %1280 = vmatpush2.msra.mxu0 0.0
        %1281 = vmatprep.subr.mxu0 0.0
        %1282 = vmatpush2.msra.mxu0 0.0
        %1283 = vmatprep.subr.mxu0 0.0
        %1284 = vmatpush2.msra.mxu0 0.0
        %1285 = vmatprep.subr.mxu0 0.0
        %1286 = vmatpush2.msra.mxu0 0.0
        %1287 = vmatprep.subr.mxu0 0.0
        %1288 = vmatpush2.msra.mxu0 0.0
        %1289 = vmatprep.subr.mxu0 0.0
        %1290 = vmatpush2.msra.mxu0 0.0
        %1291 = vmatprep.subr.mxu0 0.0
        %1292 = vmatpush2.msra.mxu0 0.0
        %1293 = vmatprep.subr.mxu0 0.0
        %1294 = vmatpush2.msra.mxu0 0.0
        %1295 = vmatprep.subr.mxu0 0.0
        %1296 = vmatpush2.msra.mxu0 0.0
        %1297 = vmatprep.subr.mxu0 0.0
        %1298 = vmatpush2.msra.mxu0 0.0
        %1299 = vmatprep.subr.mxu0 0.0
        %1300 = vmatpush2.msra.mxu0 0.0
        %1301 = vmatprep.subr.mxu0 0.0
        %1302 = vmatpush2.msra.mxu0 0.0
        %1303 = vmatprep.subr.mxu0 0.0
        %1304 = vmatpush2.msra.mxu0 0.0
        %1305 = vmatprep.subr.mxu0 0.0
        %1306 = vmatpush2.msra.mxu0 0.0
        %1307 = vmatprep.subr.mxu0 0.0
        %1308 = vmatpush2.msra.mxu0 0.0
        %1309 = vmatprep.mubr.f32.mxu0 0.0
        %1310 = vmatmul.mubr.f32.gmra.mxu0 %v1173
        %v1311 = vpop.f32.mrf.mxu0
        %v1312 = vadd.f32 %v1159, %v1311
        %v1313 = vpop.f32.mrf.mxu0
        %1314 = vdwg.mxu0
        %1315 = vmatprep.subr.mxu0 0.0
        %1316 = vmatpush1.msra.mxu0 0.0
        %1317 = vmatprep.subr.mxu0 0.0
        %1318 = vmatpush1.msra.mxu0 0.0
        %1319 = vmatprep.subr.mxu0 0.0
        %1320 = vmatpush1.msra.mxu0 0.0
        %1321 = vmatprep.subr.mxu0 0.0
        %1322 = vmatpush1.msra.mxu0 0.0
        %1323 = vmatprep.subr.mxu0 0.0
        %1324 = vmatpush1.msra.mxu0 0.0
        %1325 = vmatprep.subr.mxu0 0.0
        %1326 = vmatpush1.msra.mxu0 0.0
        %1327 = vmatprep.subr.mxu0 0.0
        %1328 = vmatpush1.msra.mxu0 0.0
        %1329 = vmatprep.subr.mxu0 0.0
        %1330 = vmatpush1.msra.mxu0 0.0
        %1331 = vmatprep.subr.mxu0 0.0
        %1332 = vmatpush1.msra.mxu0 0.0
        %1333 = vmatprep.subr.mxu0 0.0
        %1334 = vmatpush1.msra.mxu0 0.0
        %1335 = vmatprep.subr.mxu0 0.0
        %1336 = vmatpush1.msra.mxu0 0.0
        %1337 = vmatprep.subr.mxu0 0.0
        %1338 = vmatpush1.msra.mxu0 0.0
        %1339 = vmatprep.subr.mxu0 0.0
        %1340 = vmatpush1.msra.mxu0 %v1139
        %1341 = vmatprep.subr.mxu0 0.0
        %1342 = vmatpush1.msra.mxu0 %v1138
        %1343 = vmatprep.subr.mxu0 0.0
        %1344 = vmatpush1.msra.mxu0 %v1137
        %1345 = vmatprep.subr.mxu0 0.0
        %1346 = vmatpush1.msra.mxu0 %v1136
        %1347 = vmatprep.subr.mxu0 0.0
        %1348 = vmatpush2.msra.mxu0 0.0
        %1349 = vmatprep.subr.mxu0 0.0
        %1350 = vmatpush2.msra.mxu0 0.0
        %1351 = vmatprep.subr.mxu0 0.0
        %1352 = vmatpush2.msra.mxu0 0.0
        %1353 = vmatprep.subr.mxu0 0.0
        %1354 = vmatpush2.msra.mxu0 0.0
        %1355 = vmatprep.subr.mxu0 0.0
        %1356 = vmatpush2.msra.mxu0 0.0
        %1357 = vmatprep.subr.mxu0 0.0
        %1358 = vmatpush2.msra.mxu0 0.0
        %1359 = vmatprep.subr.mxu0 0.0
        %1360 = vmatpush2.msra.mxu0 0.0
        %1361 = vmatprep.subr.mxu0 0.0
        %1362 = vmatpush2.msra.mxu0 0.0
        %1363 = vmatprep.subr.mxu0 0.0
        %1364 = vmatpush2.msra.mxu0 0.0
        %1365 = vmatprep.subr.mxu0 0.0
        %1366 = vmatpush2.msra.mxu0 0.0
        %1367 = vmatprep.subr.mxu0 0.0
        %1368 = vmatpush2.msra.mxu0 0.0
        %1369 = vmatprep.subr.mxu0 0.0
        %1370 = vmatpush2.msra.mxu0 0.0
        %1371 = vmatprep.subr.mxu0 0.0
        %1372 = vmatpush2.msra.mxu0 0.0
        %1373 = vmatprep.subr.mxu0 0.0
        %1374 = vmatpush2.msra.mxu0 0.0
        %1375 = vmatprep.subr.mxu0 0.0
        %1376 = vmatpush2.msra.mxu0 0.0
        %1377 = vmatprep.subr.mxu0 0.0
        %1378 = vmatpush2.msra.mxu0 0.0
        %1379 = vmatprep.mubr.f32.mxu0 0.0
        %1380 = vmatmul.mubr.f32.gmra.mxu0 %v1173
        %v1381 = vpop.f32.mrf.mxu0
        %v1382 = vadd.f32 %v1163, %v1381
        %v1383 = vpop.f32.mrf.mxu0
        %1384 = vdwg.mxu0
        %1385 = vmatprep.subr.mxu0 0.0
        %1386 = vmatpush1.msra.mxu0 0.0
        %1387 = vmatprep.subr.mxu0 0.0
        %1388 = vmatpush1.msra.mxu0 0.0
        %1389 = vmatprep.subr.mxu0 0.0
        %1390 = vmatpush1.msra.mxu0 0.0
        %1391 = vmatprep.subr.mxu0 0.0
        %1392 = vmatpush1.msra.mxu0 0.0
        %1393 = vmatprep.subr.mxu0 0.0
        %1394 = vmatpush1.msra.mxu0 0.0
        %1395 = vmatprep.subr.mxu0 0.0
        %1396 = vmatpush1.msra.mxu0 0.0
        %1397 = vmatprep.subr.mxu0 0.0
        %1398 = vmatpush1.msra.mxu0 0.0
        %1399 = vmatprep.subr.mxu0 0.0
        %1400 = vmatpush1.msra.mxu0 0.0
        %1401 = vmatprep.subr.mxu0 0.0
        %1402 = vmatpush1.msra.mxu0 0.0
        %1403 = vmatprep.subr.mxu0 0.0
        %1404 = vmatpush1.msra.mxu0 0.0
        %1405 = vmatprep.subr.mxu0 0.0
        %1406 = vmatpush1.msra.mxu0 0.0
        %1407 = vmatprep.subr.mxu0 0.0
        %1408 = vmatpush1.msra.mxu0 0.0
        %1409 = vmatprep.subr.mxu0 0.0
        %1410 = vmatpush1.msra.mxu0 %v1143
        %1411 = vmatprep.subr.mxu0 0.0
        %1412 = vmatpush1.msra.mxu0 %v1142
        %1413 = vmatprep.subr.mxu0 0.0
        %1414 = vmatpush1.msra.mxu0 %v1141
        %1415 = vmatprep.subr.mxu0 0.0
        %1416 = vmatpush1.msra.mxu0 %v1140
        %1417 = vmatprep.subr.mxu0 0.0
        %1418 = vmatpush2.msra.mxu0 0.0
        %1419 = vmatprep.subr.mxu0 0.0
        %1420 = vmatpush2.msra.mxu0 0.0
        %1421 = vmatprep.subr.mxu0 0.0
        %1422 = vmatpush2.msra.mxu0 0.0
        %1423 = vmatprep.subr.mxu0 0.0
        %1424 = vmatpush2.msra.mxu0 0.0
        %1425 = vmatprep.subr.mxu0 0.0
        %1426 = vmatpush2.msra.mxu0 0.0
        %1427 = vmatprep.subr.mxu0 0.0
        %1428 = vmatpush2.msra.mxu0 0.0
        %1429 = vmatprep.subr.mxu0 0.0
        %1430 = vmatpush2.msra.mxu0 0.0
        %1431 = vmatprep.subr.mxu0 0.0
        %1432 = vmatpush2.msra.mxu0 0.0
        %1433 = vmatprep.subr.mxu0 0.0
        %1434 = vmatpush2.msra.mxu0 0.0
        %1435 = vmatprep.subr.mxu0 0.0
        %1436 = vmatpush2.msra.mxu0 0.0
        %1437 = vmatprep.subr.mxu0 0.0
        %1438 = vmatpush2.msra.mxu0 0.0
        %1439 = vmatprep.subr.mxu0 0.0
        %1440 = vmatpush2.msra.mxu0 0.0
        %1441 = vmatprep.subr.mxu0 0.0
        %1442 = vmatpush2.msra.mxu0 0.0
        %1443 = vmatprep.subr.mxu0 0.0
        %1444 = vmatpush2.msra.mxu0 0.0
        %1445 = vmatprep.subr.mxu0 0.0
        %1446 = vmatpush2.msra.mxu0 0.0
        %1447 = vmatprep.subr.mxu0 0.0
        %1448 = vmatpush2.msra.mxu0 0.0
        %1449 = vmatprep.mubr.f32.mxu0 0.0
        %1450 = vmatmul.mubr.f32.gmra.mxu0 %v1173
        %v1451 = vpop.f32.mrf.mxu0
        %v1452 = vadd.f32 %v1167, %v1451
        %v1453 = vpop.f32.mrf.mxu0
        %1454 = vdwg.mxu0
        %v1455 = vld [vmem:[%s9] sm:$0xff]
        %v1456 = vld [vmem:[%s9 + $0x8] sm:$0xff]
        %v1457 = vld [vmem:[%s9 + $0x10] sm:$0xff]
        %v1458 = vld [vmem:[%s9 + $0x18] sm:$0xff]
        %v1459 = vld [vmem:[%s9 + $0x20] sm:$0xff]
        %v1460 = vld [vmem:[%s9 + $0x28] sm:$0xff]
        %v1461 = vld [vmem:[%s9 + $0x30] sm:$0xff]
        %v1462 = vld [vmem:[%s9 + $0x38] sm:$0xff]
        %v1463 = vld [vmem:[%s10] sm:$0x1]
        %v1464 = vld [vmem:[%s11] sm:$0x1]
        %v1465 = vld [vmem:[%s12] sm:$0x1]
        %vm1466 = vcmask 130048
        %v1468 = vsel %vm1466, %v588, 0
        %v1471 = vsel %vm1466, %v915, 0
        %1473 = vmatprep.subr.mxu0 0.0
        %1474 = vmatpush1.xpose.msra.mxu0 0.0
        %1475 = vmatprep.subr.mxu0 0.0
        %1476 = vmatpush1.xpose.msra.mxu0 0.0
        %1477 = vmatprep.subr.mxu0 0.0
        %1478 = vmatpush1.xpose.msra.mxu0 0.0
        %1479 = vmatprep.subr.mxu0 0.0
        %1480 = vmatpush1.xpose.msra.mxu0 0.0
        %1481 = vmatprep.subr.mxu0 0.0
        %1482 = vmatpush1.xpose.msra.mxu0 0.0
        %1483 = vmatprep.subr.mxu0 0.0
        %1484 = vmatpush1.xpose.msra.mxu0 0.0
        %1485 = vmatprep.subr.mxu0 0.0
        %1486 = vmatpush1.xpose.msra.mxu0 0.0
        %1487 = vmatprep.subr.mxu0 0.0
        %1488 = vmatpush1.xpose.msra.mxu0 0.0
        %1489 = vmatprep.subr.mxu0 0.0
        %1490 = vmatpush1.xpose.msra.mxu0 0.0
        %1491 = vmatprep.subr.mxu0 0.0
        %1492 = vmatpush1.xpose.msra.mxu0 0.0
        %1493 = vmatprep.subr.mxu0 0.0
        %1494 = vmatpush1.xpose.msra.mxu0 0.0
        %1495 = vmatprep.subr.mxu0 0.0
        %1496 = vmatpush1.xpose.msra.mxu0 0.0
        %1497 = vmatprep.subr.mxu0 0.0
        %1498 = vmatpush1.xpose.msra.mxu0 0.0
        %1499 = vmatprep.subr.mxu0 0.0
        %1500 = vmatpush1.xpose.msra.mxu0 0.0
        %1501 = vmatprep.subr.mxu0 0.0
        %1502 = vmatpush1.xpose.msra.mxu0 0.0
        %1503 = vmatprep.subr.mxu0 0.0
        %1504 = vmatpush1.xpose.msra.mxu0 %v1471
        %1505 = vmatprep.subr.mxu0 0.0
        %1506 = vmatpush2.xpose.msra.mxu0 0.0
        %1507 = vmatprep.subr.mxu0 0.0
        %1508 = vmatpush2.xpose.msra.mxu0 0.0
        %1509 = vmatprep.subr.mxu0 0.0
        %1510 = vmatpush2.xpose.msra.mxu0 0.0
        %1511 = vmatprep.subr.mxu0 0.0
        %1512 = vmatpush2.xpose.msra.mxu0 0.0
        %1513 = vmatprep.subr.mxu0 0.0
        %1514 = vmatpush2.xpose.msra.mxu0 0.0
        %1515 = vmatprep.subr.mxu0 0.0
        %1516 = vmatpush2.xpose.msra.mxu0 0.0
        %1517 = vmatprep.subr.mxu0 0.0
        %1518 = vmatpush2.xpose.msra.mxu0 0.0
        %1519 = vmatprep.subr.mxu0 0.0
        %1520 = vmatpush2.xpose.msra.mxu0 0.0
        %1521 = vmatprep.subr.mxu0 0.0
        %1522 = vmatpush2.xpose.msra.mxu0 0.0
        %1523 = vmatprep.subr.mxu0 0.0
        %1524 = vmatpush2.xpose.msra.mxu0 0.0
        %1525 = vmatprep.subr.mxu0 0.0
        %1526 = vmatpush2.xpose.msra.mxu0 0.0
        %1527 = vmatprep.subr.mxu0 0.0
        %1528 = vmatpush2.xpose.msra.mxu0 0.0
        %1529 = vmatprep.subr.mxu0 0.0
        %1530 = vmatpush2.xpose.msra.mxu0 0.0
        %1531 = vmatprep.subr.mxu0 0.0
        %1532 = vmatpush2.xpose.msra.mxu0 0.0
        %1533 = vmatprep.subr.mxu0 0.0
        %1534 = vmatpush2.xpose.msra.mxu0 0.0
        %1535 = vmatprep.subr.mxu0 0.0
        %1536 = vmatpush2.xpose.msra.mxu0 0.0
        %1537 = vmatprep.mubr.f32.mxu0 0.0
        %1538 = vmatmul.mubr.f32.gmra.mxu0 %v1468
        %v1539 = vpop.f32.mrf.mxu0
        %v1540 = vadd.f32 0.0, %v1539
        %v1541 = vpop.f32.mrf.mxu0
        %1542 = vdwg.mxu0
        %v1544 = vsel %vm1466, %v658, 0
        %v1547 = vsel %vm1466, %v985, 0
        %1549 = vmatprep.subr.mxu0 0.0
        %1550 = vmatpush1.xpose.msra.mxu0 0.0
        %1551 = vmatprep.subr.mxu0 0.0
        %1552 = vmatpush1.xpose.msra.mxu0 0.0
        %1553 = vmatprep.subr.mxu0 0.0
        %1554 = vmatpush1.xpose.msra.mxu0 0.0
        %1555 = vmatprep.subr.mxu0 0.0
        %1556 = vmatpush1.xpose.msra.mxu0 0.0
        %1557 = vmatprep.subr.mxu0 0.0
        %1558 = vmatpush1.xpose.msra.mxu0 0.0
        %1559 = vmatprep.subr.mxu0 0.0
        %1560 = vmatpush1.xpose.msra.mxu0 0.0
        %1561 = vmatprep.subr.mxu0 0.0
        %1562 = vmatpush1.xpose.msra.mxu0 0.0
        %1563 = vmatprep.subr.mxu0 0.0
        %1564 = vmatpush1.xpose.msra.mxu0 0.0
        %1565 = vmatprep.subr.mxu0 0.0
        %1566 = vmatpush1.xpose.msra.mxu0 0.0
        %1567 = vmatprep.subr.mxu0 0.0
        %1568 = vmatpush1.xpose.msra.mxu0 0.0
        %1569 = vmatprep.subr.mxu0 0.0
        %1570 = vmatpush1.xpose.msra.mxu0 0.0
        %1571 = vmatprep.subr.mxu0 0.0
        %1572 = vmatpush1.xpose.msra.mxu0 0.0
        %1573 = vmatprep.subr.mxu0 0.0
        %1574 = vmatpush1.xpose.msra.mxu0 0.0
        %1575 = vmatprep.subr.mxu0 0.0
        %1576 = vmatpush1.xpose.msra.mxu0 0.0
        %1577 = vmatprep.subr.mxu0 0.0
        %1578 = vmatpush1.xpose.msra.mxu0 0.0
        %1579 = vmatprep.subr.mxu0 0.0
        %1580 = vmatpush1.xpose.msra.mxu0 %v1547
        %1581 = vmatprep.subr.mxu0 0.0
        %1582 = vmatpush2.xpose.msra.mxu0 0.0
        %1583 = vmatprep.subr.mxu0 0.0
        %1584 = vmatpush2.xpose.msra.mxu0 0.0
        %1585 = vmatprep.subr.mxu0 0.0
        %1586 = vmatpush2.xpose.msra.mxu0 0.0
        %1587 = vmatprep.subr.mxu0 0.0
        %1588 = vmatpush2.xpose.msra.mxu0 0.0
        %1589 = vmatprep.subr.mxu0 0.0
        %1590 = vmatpush2.xpose.msra.mxu0 0.0
        %1591 = vmatprep.subr.mxu0 0.0
        %1592 = vmatpush2.xpose.msra.mxu0 0.0
        %1593 = vmatprep.subr.mxu0 0.0
        %1594 = vmatpush2.xpose.msra.mxu0 0.0
        %1595 = vmatprep.subr.mxu0 0.0
        %1596 = vmatpush2.xpose.msra.mxu0 0.0
        %1597 = vmatprep.subr.mxu0 0.0
        %1598 = vmatpush2.xpose.msra.mxu0 0.0
        %1599 = vmatprep.subr.mxu0 0.0
        %1600 = vmatpush2.xpose.msra.mxu0 0.0
        %1601 = vmatprep.subr.mxu0 0.0
        %1602 = vmatpush2.xpose.msra.mxu0 0.0
        %1603 = vmatprep.subr.mxu0 0.0
        %1604 = vmatpush2.xpose.msra.mxu0 0.0
        %1605 = vmatprep.subr.mxu0 0.0
        %1606 = vmatpush2.xpose.msra.mxu0 0.0
        %1607 = vmatprep.subr.mxu0 0.0
        %1608 = vmatpush2.xpose.msra.mxu0 0.0
        %1609 = vmatprep.subr.mxu0 0.0
        %1610 = vmatpush2.xpose.msra.mxu0 0.0
        %1611 = vmatprep.subr.mxu0 0.0
        %1612 = vmatpush2.xpose.msra.mxu0 0.0
        %1613 = vmatprep.mubr.f32.mxu0 0.0
        %1614 = vmatmul.mubr.f32.gmra.mxu0 %v1544
        %v1615 = vpop.f32.mrf.mxu0
        %v1616 = vadd.f32 0.0, %v1615
        %v1617 = vpop.f32.mrf.mxu0
        %1618 = vdwg.mxu0
        %v1620 = vsel %vm1466, %v728, 0
        %v1623 = vsel %vm1466, %v1055, 0
        %1625 = vmatprep.subr.mxu0 0.0
        %1626 = vmatpush1.xpose.msra.mxu0 0.0
        %1627 = vmatprep.subr.mxu0 0.0
        %1628 = vmatpush1.xpose.msra.mxu0 0.0
        %1629 = vmatprep.subr.mxu0 0.0
        %1630 = vmatpush1.xpose.msra.mxu0 0.0
        %1631 = vmatprep.subr.mxu0 0.0
        %1632 = vmatpush1.xpose.msra.mxu0 0.0
        %1633 = vmatprep.subr.mxu0 0.0
        %1634 = vmatpush1.xpose.msra.mxu0 0.0
        %1635 = vmatprep.subr.mxu0 0.0
        %1636 = vmatpush1.xpose.msra.mxu0 0.0
        %1637 = vmatprep.subr.mxu0 0.0
        %1638 = vmatpush1.xpose.msra.mxu0 0.0
        %1639 = vmatprep.subr.mxu0 0.0
        %1640 = vmatpush1.xpose.msra.mxu0 0.0
        %1641 = vmatprep.subr.mxu0 0.0
        %1642 = vmatpush1.xpose.msra.mxu0 0.0
        %1643 = vmatprep.subr.mxu0 0.0
        %1644 = vmatpush1.xpose.msra.mxu0 0.0
        %1645 = vmatprep.subr.mxu0 0.0
        %1646 = vmatpush1.xpose.msra.mxu0 0.0
        %1647 = vmatprep.subr.mxu0 0.0
        %1648 = vmatpush1.xpose.msra.mxu0 0.0
        %1649 = vmatprep.subr.mxu0 0.0
        %1650 = vmatpush1.xpose.msra.mxu0 0.0
        %1651 = vmatprep.subr.mxu0 0.0
        %1652 = vmatpush1.xpose.msra.mxu0 0.0
        %1653 = vmatprep.subr.mxu0 0.0
        %1654 = vmatpush1.xpose.msra.mxu0 0.0
        %1655 = vmatprep.subr.mxu0 0.0
        %1656 = vmatpush1.xpose.msra.mxu0 %v1623
        %1657 = vmatprep.subr.mxu0 0.0
        %1658 = vmatpush2.xpose.msra.mxu0 0.0
        %1659 = vmatprep.subr.mxu0 0.0
        %1660 = vmatpush2.xpose.msra.mxu0 0.0
        %1661 = vmatprep.subr.mxu0 0.0
        %1662 = vmatpush2.xpose.msra.mxu0 0.0
        %1663 = vmatprep.subr.mxu0 0.0
        %1664 = vmatpush2.xpose.msra.mxu0 0.0
        %1665 = vmatprep.subr.mxu0 0.0
        %1666 = vmatpush2.xpose.msra.mxu0 0.0
        %1667 = vmatprep.subr.mxu0 0.0
        %1668 = vmatpush2.xpose.msra.mxu0 0.0
        %1669 = vmatprep.subr.mxu0 0.0
        %1670 = vmatpush2.xpose.msra.mxu0 0.0
        %1671 = vmatprep.subr.mxu0 0.0
        %1672 = vmatpush2.xpose.msra.mxu0 0.0
        %1673 = vmatprep.subr.mxu0 0.0
        %1674 = vmatpush2.xpose.msra.mxu0 0.0
        %1675 = vmatprep.subr.mxu0 0.0
        %1676 = vmatpush2.xpose.msra.mxu0 0.0
        %1677 = vmatprep.subr.mxu0 0.0
        %1678 = vmatpush2.xpose.msra.mxu0 0.0
        %1679 = vmatprep.subr.mxu0 0.0
        %1680 = vmatpush2.xpose.msra.mxu0 0.0
        %1681 = vmatprep.subr.mxu0 0.0
        %1682 = vmatpush2.xpose.msra.mxu0 0.0
        %1683 = vmatprep.subr.mxu0 0.0
        %1684 = vmatpush2.xpose.msra.mxu0 0.0
        %1685 = vmatprep.subr.mxu0 0.0
        %1686 = vmatpush2.xpose.msra.mxu0 0.0
        %1687 = vmatprep.subr.mxu0 0.0
        %1688 = vmatpush2.xpose.msra.mxu0 0.0
        %1689 = vmatprep.mubr.f32.mxu0 0.0
        %1690 = vmatmul.mubr.f32.gmra.mxu0 %v1620
        %v1691 = vpop.f32.mrf.mxu0
        %v1692 = vadd.f32 0.0, %v1691
        %v1693 = vpop.f32.mrf.mxu0
        %1694 = vdwg.mxu0
        %v1696 = vsel %vm1466, %v798, 0
        %v1699 = vsel %vm1466, %v1125, 0
        %1701 = vmatprep.subr.mxu0 0.0
        %1702 = vmatpush1.xpose.msra.mxu0 0.0
        %1703 = vmatprep.subr.mxu0 0.0
        %1704 = vmatpush1.xpose.msra.mxu0 0.0
        %1705 = vmatprep.subr.mxu0 0.0
        %1706 = vmatpush1.xpose.msra.mxu0 0.0
        %1707 = vmatprep.subr.mxu0 0.0
        %1708 = vmatpush1.xpose.msra.mxu0 0.0
        %1709 = vmatprep.subr.mxu0 0.0
        %1710 = vmatpush1.xpose.msra.mxu0 0.0
        %1711 = vmatprep.subr.mxu0 0.0
        %1712 = vmatpush1.xpose.msra.mxu0 0.0
        %1713 = vmatprep.subr.mxu0 0.0
        %1714 = vmatpush1.xpose.msra.mxu0 0.0
        %1715 = vmatprep.subr.mxu0 0.0
        %1716 = vmatpush1.xpose.msra.mxu0 0.0
        %1717 = vmatprep.subr.mxu0 0.0
        %1718 = vmatpush1.xpose.msra.mxu0 0.0
        %1719 = vmatprep.subr.mxu0 0.0
        %1720 = vmatpush1.xpose.msra.mxu0 0.0
        %1721 = vmatprep.subr.mxu0 0.0
        %1722 = vmatpush1.xpose.msra.mxu0 0.0
        %1723 = vmatprep.subr.mxu0 0.0
        %1724 = vmatpush1.xpose.msra.mxu0 0.0
        %1725 = vmatprep.subr.mxu0 0.0
        %1726 = vmatpush1.xpose.msra.mxu0 0.0
        %1727 = vmatprep.subr.mxu0 0.0
        %1728 = vmatpush1.xpose.msra.mxu0 0.0
        %1729 = vmatprep.subr.mxu0 0.0
        %1730 = vmatpush1.xpose.msra.mxu0 0.0
        %1731 = vmatprep.subr.mxu0 0.0
        %1732 = vmatpush1.xpose.msra.mxu0 %v1699
        %1733 = vmatprep.subr.mxu0 0.0
        %1734 = vmatpush2.xpose.msra.mxu0 0.0
        %1735 = vmatprep.subr.mxu0 0.0
        %1736 = vmatpush2.xpose.msra.mxu0 0.0
        %1737 = vmatprep.subr.mxu0 0.0
        %1738 = vmatpush2.xpose.msra.mxu0 0.0
        %1739 = vmatprep.subr.mxu0 0.0
        %1740 = vmatpush2.xpose.msra.mxu0 0.0
        %1741 = vmatprep.subr.mxu0 0.0
        %1742 = vmatpush2.xpose.msra.mxu0 0.0
        %1743 = vmatprep.subr.mxu0 0.0
        %1744 = vmatpush2.xpose.msra.mxu0 0.0
        %1745 = vmatprep.subr.mxu0 0.0
        %1746 = vmatpush2.xpose.msra.mxu0 0.0
        %1747 = vmatprep.subr.mxu0 0.0
        %1748 = vmatpush2.xpose.msra.mxu0 0.0
        %1749 = vmatprep.subr.mxu0 0.0
        %1750 = vmatpush2.xpose.msra.mxu0 0.0
        %1751 = vmatprep.subr.mxu0 0.0
        %1752 = vmatpush2.xpose.msra.mxu0 0.0
        %1753 = vmatprep.subr.mxu0 0.0
        %1754 = vmatpush2.xpose.msra.mxu0 0.0
        %1755 = vmatprep.subr.mxu0 0.0
        %1756 = vmatpush2.xpose.msra.mxu0 0.0
        %1757 = vmatprep.subr.mxu0 0.0
        %1758 = vmatpush2.xpose.msra.mxu0 0.0
        %1759 = vmatprep.subr.mxu0 0.0
        %1760 = vmatpush2.xpose.msra.mxu0 0.0
        %1761 = vmatprep.subr.mxu0 0.0
        %1762 = vmatpush2.xpose.msra.mxu0 0.0
        %1763 = vmatprep.subr.mxu0 0.0
        %1764 = vmatpush2.xpose.msra.mxu0 0.0
        %1765 = vmatprep.mubr.f32.mxu0 0.0
        %1766 = vmatmul.mubr.f32.gmra.mxu0 %v1696
        %v1767 = vpop.f32.mrf.mxu0
        %v1768 = vadd.f32 0.0, %v1767
        %v1769 = vpop.f32.mrf.mxu0
        %1770 = vdwg.mxu0
        %v1771 = vmul.f32 %v1540, 0.35355338
        %v1772 = vmul.f32 %v1616, 0.35355338
        %v1773 = vmul.f32 %v1692, 0.35355338
        %v1774 = vmul.f32 %v1768, 0.35355338
        %vm1775 = vcmask 64512
        %v1776 = vsel %vm1775, %v1771, -inf
        %1777 = vmax.xlane.f32.xlu0 %v1776
        %v1778 = vpop.xlane.xlu0 %1777
        %v1779 = vsel %vm1775, %v1772, -inf
        %1780 = vmax.xlane.f32.xlu0 %v1779
        %v1781 = vpop.xlane.xlu0 %1780
        %v1782 = vsel %vm1775, %v1773, -inf
        %1783 = vmax.xlane.f32.xlu0 %v1782
        %v1784 = vpop.xlane.xlu0 %1783
        %v1785 = vsel %vm1775, %v1774, -inf
        %1786 = vmax.xlane.f32.xlu0 %v1785
        %v1787 = vpop.xlane.xlu0 %1786
        %v1788 = vsub.f32 %v1771, %v1778
        %v1789 = vsub.f32 %v1772, %v1781
        %v1790 = vsub.f32 %v1773, %v1784
        %v1791 = vsub.f32 %v1774, %v1787
        %v1792 = vmul.f32 %v1788, 1.442695
        %v1793 = vpow.pop %v1792
        %v1794 = vmul.f32 %v1789, 1.442695
        %v1795 = vpow.pop %v1794
        %v1796 = vmul.f32 %v1790, 1.442695
        %v1797 = vpow.pop %v1796
        %v1798 = vmul.f32 %v1791, 1.442695
        %v1799 = vpow.pop %v1798
        %v1800 = vsel %vm1775, %v1793, 0.0
        %1801 = vadd.xlane.f32.xlu0 %v1800
        %v1802 = vpop.xlane.xlu0 %1801
        %v1803 = vsel %vm1775, %v1795, 0.0
        %1804 = vadd.xlane.f32.xlu0 %v1803
        %v1805 = vpop.xlane.xlu0 %1804
        %v1806 = vsel %vm1775, %v1797, 0.0
        %1807 = vadd.xlane.f32.xlu0 %v1806
        %v1808 = vpop.xlane.xlu0 %1807
        %v1809 = vsel %vm1775, %v1799, 0.0
        %1810 = vadd.xlane.f32.xlu0 %v1809
        %v1811 = vpop.xlane.xlu0 %1810
        %v1812 = vrcp.pop %v1802
        %v1813 = vrcp.pop %v1805
        %v1814 = vrcp.pop %v1808
        %v1815 = vrcp.pop %v1811
        %v1816 = vmul.f32 %v1793, %v1812
        %v1817 = vmul.f32 %v1795, %v1813
        %v1818 = vmul.f32 %v1797, %v1814
        %v1819 = vmul.f32 %v1799, %v1815
        %v1821 = vsel %vm1775, %v1816, 0
        %1823 = vmatprep.subr.mxu0 0.0
        %1824 = vmatpush1.msra.mxu0 0.0
        %1825 = vmatprep.subr.mxu0 0.0
        %1826 = vmatpush1.msra.mxu0 0.0
        %1827 = vmatprep.subr.mxu0 0.0
        %1828 = vmatpush1.msra.mxu0 0.0
        %1829 = vmatprep.subr.mxu0 0.0
        %1830 = vmatpush1.msra.mxu0 0.0
        %1831 = vmatprep.subr.mxu0 0.0
        %1832 = vmatpush1.msra.mxu0 0.0
        %1833 = vmatprep.subr.mxu0 0.0
        %1834 = vmatpush1.msra.mxu0 0.0
        %1835 = vmatprep.subr.mxu0 0.0
        %1836 = vmatpush1.msra.mxu0 0.0
        %1837 = vmatprep.subr.mxu0 0.0
        %1838 = vmatpush1.msra.mxu0 0.0
        %1839 = vmatprep.subr.mxu0 0.0
        %1840 = vmatpush1.msra.mxu0 0.0
        %1841 = vmatprep.subr.mxu0 0.0
        %1842 = vmatpush1.msra.mxu0 0.0
        %1843 = vmatprep.subr.mxu0 0.0
        %1844 = vmatpush1.msra.mxu0 0.0
        %1845 = vmatprep.subr.mxu0 0.0
        %1846 = vmatpush1.msra.mxu0 0.0
        %1847 = vmatprep.subr.mxu0 0.0
        %1848 = vmatpush1.msra.mxu0 0.0
        %1849 = vmatprep.subr.mxu0 0.0
        %1850 = vmatpush1.msra.mxu0 0.0
        %1851 = vmatprep.subr.mxu0 0.0
        %1852 = vmatpush1.msra.mxu0 0.0
        %1853 = vmatprep.subr.mxu0 0.0
        %1854 = vmatpush1.msra.mxu0 %v1242
        %1855 = vmatprep.subr.mxu0 0.0
        %1856 = vmatpush2.msra.mxu0 0.0
        %1857 = vmatprep.subr.mxu0 0.0
        %1858 = vmatpush2.msra.mxu0 0.0
        %1859 = vmatprep.subr.mxu0 0.0
        %1860 = vmatpush2.msra.mxu0 0.0
        %1861 = vmatprep.subr.mxu0 0.0
        %1862 = vmatpush2.msra.mxu0 0.0
        %1863 = vmatprep.subr.mxu0 0.0
        %1864 = vmatpush2.msra.mxu0 0.0
        %1865 = vmatprep.subr.mxu0 0.0
        %1866 = vmatpush2.msra.mxu0 0.0
        %1867 = vmatprep.subr.mxu0 0.0
        %1868 = vmatpush2.msra.mxu0 0.0
        %1869 = vmatprep.subr.mxu0 0.0
        %1870 = vmatpush2.msra.mxu0 0.0
        %1871 = vmatprep.subr.mxu0 0.0
        %1872 = vmatpush2.msra.mxu0 0.0
        %1873 = vmatprep.subr.mxu0 0.0
        %1874 = vmatpush2.msra.mxu0 0.0
        %1875 = vmatprep.subr.mxu0 0.0
        %1876 = vmatpush2.msra.mxu0 0.0
        %1877 = vmatprep.subr.mxu0 0.0
        %1878 = vmatpush2.msra.mxu0 0.0
        %1879 = vmatprep.subr.mxu0 0.0
        %1880 = vmatpush2.msra.mxu0 0.0
        %1881 = vmatprep.subr.mxu0 0.0
        %1882 = vmatpush2.msra.mxu0 0.0
        %1883 = vmatprep.subr.mxu0 0.0
        %1884 = vmatpush2.msra.mxu0 0.0
        %1885 = vmatprep.subr.mxu0 0.0
        %1886 = vmatpush2.msra.mxu0 0.0
        %1887 = vmatprep.mubr.f32.mxu0 0.0
        %1888 = vmatmul.mubr.f32.gmra.mxu0 %v1821
        %v1889 = vpop.f32.mrf.mxu0
        %v1890 = vadd.f32 0.0, %v1889
        %v1891 = vpop.f32.mrf.mxu0
        %1892 = vdwg.mxu0
        %v1894 = vsel %vm1775, %v1817, 0
        %1896 = vmatprep.subr.mxu0 0.0
        %1897 = vmatpush1.msra.mxu0 0.0
        %1898 = vmatprep.subr.mxu0 0.0
        %1899 = vmatpush1.msra.mxu0 0.0
        %1900 = vmatprep.subr.mxu0 0.0
        %1901 = vmatpush1.msra.mxu0 0.0
        %1902 = vmatprep.subr.mxu0 0.0
        %1903 = vmatpush1.msra.mxu0 0.0
        %1904 = vmatprep.subr.mxu0 0.0
        %1905 = vmatpush1.msra.mxu0 0.0
        %1906 = vmatprep.subr.mxu0 0.0
        %1907 = vmatpush1.msra.mxu0 0.0
        %1908 = vmatprep.subr.mxu0 0.0
        %1909 = vmatpush1.msra.mxu0 0.0
        %1910 = vmatprep.subr.mxu0 0.0
        %1911 = vmatpush1.msra.mxu0 0.0
        %1912 = vmatprep.subr.mxu0 0.0
        %1913 = vmatpush1.msra.mxu0 0.0
        %1914 = vmatprep.subr.mxu0 0.0
        %1915 = vmatpush1.msra.mxu0 0.0
        %1916 = vmatprep.subr.mxu0 0.0
        %1917 = vmatpush1.msra.mxu0 0.0
        %1918 = vmatprep.subr.mxu0 0.0
        %1919 = vmatpush1.msra.mxu0 0.0
        %1920 = vmatprep.subr.mxu0 0.0
        %1921 = vmatpush1.msra.mxu0 0.0
        %1922 = vmatprep.subr.mxu0 0.0
        %1923 = vmatpush1.msra.mxu0 0.0
        %1924 = vmatprep.subr.mxu0 0.0
        %1925 = vmatpush1.msra.mxu0 0.0
        %1926 = vmatprep.subr.mxu0 0.0
        %1927 = vmatpush1.msra.mxu0 %v1312
        %1928 = vmatprep.subr.mxu0 0.0
        %1929 = vmatpush2.msra.mxu0 0.0
        %1930 = vmatprep.subr.mxu0 0.0
        %1931 = vmatpush2.msra.mxu0 0.0
        %1932 = vmatprep.subr.mxu0 0.0
        %1933 = vmatpush2.msra.mxu0 0.0
        %1934 = vmatprep.subr.mxu0 0.0
        %1935 = vmatpush2.msra.mxu0 0.0
        %1936 = vmatprep.subr.mxu0 0.0
        %1937 = vmatpush2.msra.mxu0 0.0
        %1938 = vmatprep.subr.mxu0 0.0
        %1939 = vmatpush2.msra.mxu0 0.0
        %1940 = vmatprep.subr.mxu0 0.0
        %1941 = vmatpush2.msra.mxu0 0.0
        %1942 = vmatprep.subr.mxu0 0.0
        %1943 = vmatpush2.msra.mxu0 0.0
        %1944 = vmatprep.subr.mxu0 0.0
        %1945 = vmatpush2.msra.mxu0 0.0
        %1946 = vmatprep.subr.mxu0 0.0
        %1947 = vmatpush2.msra.mxu0 0.0
        %1948 = vmatprep.subr.mxu0 0.0
        %1949 = vmatpush2.msra.mxu0 0.0
        %1950 = vmatprep.subr.mxu0 0.0
        %1951 = vmatpush2.msra.mxu0 0.0
        %1952 = vmatprep.subr.mxu0 0.0
        %1953 = vmatpush2.msra.mxu0 0.0
        %1954 = vmatprep.subr.mxu0 0.0
        %1955 = vmatpush2.msra.mxu0 0.0
        %1956 = vmatprep.subr.mxu0 0.0
        %1957 = vmatpush2.msra.mxu0 0.0
        %1958 = vmatprep.subr.mxu0 0.0
        %1959 = vmatpush2.msra.mxu0 0.0
        %1960 = vmatprep.mubr.f32.mxu0 0.0
        %1961 = vmatmul.mubr.f32.gmra.mxu0 %v1894
        %v1962 = vpop.f32.mrf.mxu0
        %v1963 = vadd.f32 0.0, %v1962
        %v1964 = vpop.f32.mrf.mxu0
        %1965 = vdwg.mxu0
        %v1967 = vsel %vm1775, %v1818, 0
        %1969 = vmatprep.subr.mxu0 0.0
        %1970 = vmatpush1.msra.mxu0 0.0
        %1971 = vmatprep.subr.mxu0 0.0
        %1972 = vmatpush1.msra.mxu0 0.0
        %1973 = vmatprep.subr.mxu0 0.0
        %1974 = vmatpush1.msra.mxu0 0.0
        %1975 = vmatprep.subr.mxu0 0.0
        %1976 = vmatpush1.msra.mxu0 0.0
        %1977 = vmatprep.subr.mxu0 0.0
        %1978 = vmatpush1.msra.mxu0 0.0
        %1979 = vmatprep.subr.mxu0 0.0
        %1980 = vmatpush1.msra.mxu0 0.0
        %1981 = vmatprep.subr.mxu0 0.0
        %1982 = vmatpush1.msra.mxu0 0.0
        %1983 = vmatprep.subr.mxu0 0.0
        %1984 = vmatpush1.msra.mxu0 0.0
        %1985 = vmatprep.subr.mxu0 0.0
        %1986 = vmatpush1.msra.mxu0 0.0
        %1987 = vmatprep.subr.mxu0 0.0
        %1988 = vmatpush1.msra.mxu0 0.0
        %1989 = vmatprep.subr.mxu0 0.0
        %1990 = vmatpush1.msra.mxu0 0.0
        %1991 = vmatprep.subr.mxu0 0.0
        %1992 = vmatpush1.msra.mxu0 0.0
        %1993 = vmatprep.subr.mxu0 0.0
        %1994 = vmatpush1.msra.mxu0 0.0
        %1995 = vmatprep.subr.mxu0 0.0
        %1996 = vmatpush1.msra.mxu0 0.0
        %1997 = vmatprep.subr.mxu0 0.0
        %1998 = vmatpush1.msra.mxu0 0.0
        %1999 = vmatprep.subr.mxu0 0.0
        %2000 = vmatpush1.msra.mxu0 %v1382
        %2001 = vmatprep.subr.mxu0 0.0
        %2002 = vmatpush2.msra.mxu0 0.0
        %2003 = vmatprep.subr.mxu0 0.0
        %2004 = vmatpush2.msra.mxu0 0.0
        %2005 = vmatprep.subr.mxu0 0.0
        %2006 = vmatpush2.msra.mxu0 0.0
        %2007 = vmatprep.subr.mxu0 0.0
        %2008 = vmatpush2.msra.mxu0 0.0
        %2009 = vmatprep.subr.mxu0 0.0
        %2010 = vmatpush2.msra.mxu0 0.0
        %2011 = vmatprep.subr.mxu0 0.0
        %2012 = vmatpush2.msra.mxu0 0.0
        %2013 = vmatprep.subr.mxu0 0.0
        %2014 = vmatpush2.msra.mxu0 0.0
        %2015 = vmatprep.subr.mxu0 0.0
        %2016 = vmatpush2.msra.mxu0 0.0
        %2017 = vmatprep.subr.mxu0 0.0
        %2018 = vmatpush2.msra.mxu0 0.0
        %2019 = vmatprep.subr.mxu0 0.0
        %2020 = vmatpush2.msra.mxu0 0.0
        %2021 = vmatprep.subr.mxu0 0.0
        %2022 = vmatpush2.msra.mxu0 0.0
        %2023 = vmatprep.subr.mxu0 0.0
        %2024 = vmatpush2.msra.mxu0 0.0
        %2025 = vmatprep.subr.mxu0 0.0
        %2026 = vmatpush2.msra.mxu0 0.0
        %2027 = vmatprep.subr.mxu0 0.0
        %2028 = vmatpush2.msra.mxu0 0.0
        %2029 = vmatprep.subr.mxu0 0.0
        %2030 = vmatpush2.msra.mxu0 0.0
        %2031 = vmatprep.subr.mxu0 0.0
        %2032 = vmatpush2.msra.mxu0 0.0
        %2033 = vmatprep.mubr.f32.mxu0 0.0
        %2034 = vmatmul.mubr.f32.gmra.mxu0 %v1967
        %v2035 = vpop.f32.mrf.mxu0
        %v2036 = vadd.f32 0.0, %v2035
        %v2037 = vpop.f32.mrf.mxu0
        %2038 = vdwg.mxu0
        %v2040 = vsel %vm1775, %v1819, 0
        %2042 = vmatprep.subr.mxu0 0.0
        %2043 = vmatpush1.msra.mxu0 0.0
        %2044 = vmatprep.subr.mxu0 0.0
        %2045 = vmatpush1.msra.mxu0 0.0
        %2046 = vmatprep.subr.mxu0 0.0
        %2047 = vmatpush1.msra.mxu0 0.0
        %2048 = vmatprep.subr.mxu0 0.0
        %2049 = vmatpush1.msra.mxu0 0.0
        %2050 = vmatprep.subr.mxu0 0.0
        %2051 = vmatpush1.msra.mxu0 0.0
        %2052 = vmatprep.subr.mxu0 0.0
        %2053 = vmatpush1.msra.mxu0 0.0
        %2054 = vmatprep.subr.mxu0 0.0
        %2055 = vmatpush1.msra.mxu0 0.0
        %2056 = vmatprep.subr.mxu0 0.0
        %2057 = vmatpush1.msra.mxu0 0.0
        %2058 = vmatprep.subr.mxu0 0.0
        %2059 = vmatpush1.msra.mxu0 0.0
        %2060 = vmatprep.subr.mxu0 0.0
        %2061 = vmatpush1.msra.mxu0 0.0
        %2062 = vmatprep.subr.mxu0 0.0
        %2063 = vmatpush1.msra.mxu0 0.0
        %2064 = vmatprep.subr.mxu0 0.0
        %2065 = vmatpush1.msra.mxu0 0.0
        %2066 = vmatprep.subr.mxu0 0.0
        %2067 = vmatpush1.msra.mxu0 0.0
        %2068 = vmatprep.subr.mxu0 0.0
        %2069 = vmatpush1.msra.mxu0 0.0
        %2070 = vmatprep.subr.mxu0 0.0
        %2071 = vmatpush1.msra.mxu0 0.0
        %2072 = vmatprep.subr.mxu0 0.0
        %2073 = vmatpush1.msra.mxu0 %v1452
        %2074 = vmatprep.subr.mxu0 0.0
        %2075 = vmatpush2.msra.mxu0 0.0
        %2076 = vmatprep.subr.mxu0 0.0
        %2077 = vmatpush2.msra.mxu0 0.0
        %2078 = vmatprep.subr.mxu0 0.0
        %2079 = vmatpush2.msra.mxu0 0.0
        %2080 = vmatprep.subr.mxu0 0.0
        %2081 = vmatpush2.msra.mxu0 0.0
        %2082 = vmatprep.subr.mxu0 0.0
        %2083 = vmatpush2.msra.mxu0 0.0
        %2084 = vmatprep.subr.mxu0 0.0
        %2085 = vmatpush2.msra.mxu0 0.0
        %2086 = vmatprep.subr.mxu0 0.0
        %2087 = vmatpush2.msra.mxu0 0.0
        %2088 = vmatprep.subr.mxu0 0.0
        %2089 = vmatpush2.msra.mxu0 0.0
        %2090 = vmatprep.subr.mxu0 0.0
        %2091 = vmatpush2.msra.mxu0 0.0
        %2092 = vmatprep.subr.mxu0 0.0
        %2093 = vmatpush2.msra.mxu0 0.0
        %2094 = vmatprep.subr.mxu0 0.0
        %2095 = vmatpush2.msra.mxu0 0.0
        %2096 = vmatprep.subr.mxu0 0.0
        %2097 = vmatpush2.msra.mxu0 0.0
        %2098 = vmatprep.subr.mxu0 0.0
        %2099 = vmatpush2.msra.mxu0 0.0
        %2100 = vmatprep.subr.mxu0 0.0
        %2101 = vmatpush2.msra.mxu0 0.0
        %2102 = vmatprep.subr.mxu0 0.0
        %2103 = vmatpush2.msra.mxu0 0.0
        %2104 = vmatprep.subr.mxu0 0.0
        %2105 = vmatpush2.msra.mxu0 0.0
        %2106 = vmatprep.mubr.f32.mxu0 0.0
        %2107 = vmatmul.mubr.f32.gmra.mxu0 %v2040
        %v2108 = vpop.f32.mrf.mxu0
        %v2109 = vadd.f32 0.0, %v2108
        %v2110 = vpop.f32.mrf.mxu0
        %2111 = vdwg.mxu0
        %v2113 = vsel %vm1466, %v1890, 0
        %2115 = vmatprep.subr.mxu0 0.0
        %2116 = vmatpush1.msra.mxu0 0.0
        %2117 = vmatprep.subr.mxu0 0.0
        %2118 = vmatpush1.msra.mxu0 0.0
        %2119 = vmatprep.subr.mxu0 0.0
        %2120 = vmatpush1.msra.mxu0 0.0
        %2121 = vmatprep.subr.mxu0 0.0
        %2122 = vmatpush1.msra.mxu0 0.0
        %2123 = vmatprep.subr.mxu0 0.0
        %2124 = vmatpush1.msra.mxu0 0.0
        %2125 = vmatprep.subr.mxu0 0.0
        %2126 = vmatpush1.msra.mxu0 0.0
        %2127 = vmatprep.subr.mxu0 0.0
        %2128 = vmatpush1.msra.mxu0 0.0
        %2129 = vmatprep.subr.mxu0 0.0
        %2130 = vmatpush1.msra.mxu0 0.0
        %2131 = vmatprep.subr.mxu0 0.0
        %2132 = vmatpush1.msra.mxu0 0.0
        %2133 = vmatprep.subr.mxu0 0.0
        %2134 = vmatpush1.msra.mxu0 0.0
        %2135 = vmatprep.subr.mxu0 0.0
        %2136 = vmatpush1.msra.mxu0 0.0
        %2137 = vmatprep.subr.mxu0 0.0
        %2138 = vmatpush1.msra.mxu0 0.0
        %2139 = vmatprep.subr.mxu0 0.0
        %2140 = vmatpush1.msra.mxu0 0.0
        %2141 = vmatprep.subr.mxu0 0.0
        %2142 = vmatpush1.msra.mxu0 0.0
        %2143 = vmatprep.subr.mxu0 0.0
        %2144 = vmatpush1.msra.mxu0 %v1456
        %2145 = vmatprep.subr.mxu0 0.0
        %2146 = vmatpush1.msra.mxu0 %v1455
        %2147 = vmatprep.subr.mxu0 0.0
        %2148 = vmatpush2.msra.mxu0 0.0
        %2149 = vmatprep.subr.mxu0 0.0
        %2150 = vmatpush2.msra.mxu0 0.0
        %2151 = vmatprep.subr.mxu0 0.0
        %2152 = vmatpush2.msra.mxu0 0.0
        %2153 = vmatprep.subr.mxu0 0.0
        %2154 = vmatpush2.msra.mxu0 0.0
        %2155 = vmatprep.subr.mxu0 0.0
        %2156 = vmatpush2.msra.mxu0 0.0
        %2157 = vmatprep.subr.mxu0 0.0
        %2158 = vmatpush2.msra.mxu0 0.0
        %2159 = vmatprep.subr.mxu0 0.0
        %2160 = vmatpush2.msra.mxu0 0.0
        %2161 = vmatprep.subr.mxu0 0.0
        %2162 = vmatpush2.msra.mxu0 0.0
        %2163 = vmatprep.subr.mxu0 0.0
        %2164 = vmatpush2.msra.mxu0 0.0
        %2165 = vmatprep.subr.mxu0 0.0
        %2166 = vmatpush2.msra.mxu0 0.0
        %2167 = vmatprep.subr.mxu0 0.0
        %2168 = vmatpush2.msra.mxu0 0.0
        %2169 = vmatprep.subr.mxu0 0.0
        %2170 = vmatpush2.msra.mxu0 0.0
        %2171 = vmatprep.subr.mxu0 0.0
        %2172 = vmatpush2.msra.mxu0 0.0
        %2173 = vmatprep.subr.mxu0 0.0
        %2174 = vmatpush2.msra.mxu0 0.0
        %2175 = vmatprep.subr.mxu0 0.0
        %2176 = vmatpush2.msra.mxu0 0.0
        %2177 = vmatprep.subr.mxu0 0.0
        %2178 = vmatpush2.msra.mxu0 0.0
        %2179 = vmatprep.mubr.f32.mxu0 0.0
        %2180 = vmatmul.mubr.f32.gmra.mxu0 %v2113
        %v2181 = vpop.f32.mrf.mxu0
        %v2182 = vadd.f32 0.0, %v2181
        %v2183 = vpop.f32.mrf.mxu0
        %2184 = vdwg.mxu0
        %v2186 = vsel %vm1466, %v1963, 0
        %2188 = vmatprep.subr.mxu0 0.0
        %2189 = vmatpush1.msra.mxu0 0.0
        %2190 = vmatprep.subr.mxu0 0.0
        %2191 = vmatpush1.msra.mxu0 0.0
        %2192 = vmatprep.subr.mxu0 0.0
        %2193 = vmatpush1.msra.mxu0 0.0
        %2194 = vmatprep.subr.mxu0 0.0
        %2195 = vmatpush1.msra.mxu0 0.0
        %2196 = vmatprep.subr.mxu0 0.0
        %2197 = vmatpush1.msra.mxu0 0.0
        %2198 = vmatprep.subr.mxu0 0.0
        %2199 = vmatpush1.msra.mxu0 0.0
        %2200 = vmatprep.subr.mxu0 0.0
        %2201 = vmatpush1.msra.mxu0 0.0
        %2202 = vmatprep.subr.mxu0 0.0
        %2203 = vmatpush1.msra.mxu0 0.0
        %2204 = vmatprep.subr.mxu0 0.0
        %2205 = vmatpush1.msra.mxu0 0.0
        %2206 = vmatprep.subr.mxu0 0.0
        %2207 = vmatpush1.msra.mxu0 0.0
        %2208 = vmatprep.subr.mxu0 0.0
        %2209 = vmatpush1.msra.mxu0 0.0
        %2210 = vmatprep.subr.mxu0 0.0
        %2211 = vmatpush1.msra.mxu0 0.0
        %2212 = vmatprep.subr.mxu0 0.0
        %2213 = vmatpush1.msra.mxu0 0.0
        %2214 = vmatprep.subr.mxu0 0.0
        %2215 = vmatpush1.msra.mxu0 0.0
        %2216 = vmatprep.subr.mxu0 0.0
        %2217 = vmatpush1.msra.mxu0 %v1458
        %2218 = vmatprep.subr.mxu0 0.0
        %2219 = vmatpush1.msra.mxu0 %v1457
        %2220 = vmatprep.subr.mxu0 0.0
        %2221 = vmatpush2.msra.mxu0 0.0
        %2222 = vmatprep.subr.mxu0 0.0
        %2223 = vmatpush2.msra.mxu0 0.0
        %2224 = vmatprep.subr.mxu0 0.0
        %2225 = vmatpush2.msra.mxu0 0.0
        %2226 = vmatprep.subr.mxu0 0.0
        %2227 = vmatpush2.msra.mxu0 0.0
        %2228 = vmatprep.subr.mxu0 0.0
        %2229 = vmatpush2.msra.mxu0 0.0
        %2230 = vmatprep.subr.mxu0 0.0
        %2231 = vmatpush2.msra.mxu0 0.0
        %2232 = vmatprep.subr.mxu0 0.0
        %2233 = vmatpush2.msra.mxu0 0.0
        %2234 = vmatprep.subr.mxu0 0.0
        %2235 = vmatpush2.msra.mxu0 0.0
        %2236 = vmatprep.subr.mxu0 0.0
        %2237 = vmatpush2.msra.mxu0 0.0
        %2238 = vmatprep.subr.mxu0 0.0
        %2239 = vmatpush2.msra.mxu0 0.0
        %2240 = vmatprep.subr.mxu0 0.0
        %2241 = vmatpush2.msra.mxu0 0.0
        %2242 = vmatprep.subr.mxu0 0.0
        %2243 = vmatpush2.msra.mxu0 0.0
        %2244 = vmatprep.subr.mxu0 0.0
        %2245 = vmatpush2.msra.mxu0 0.0
        %2246 = vmatprep.subr.mxu0 0.0
        %2247 = vmatpush2.msra.mxu0 0.0
        %2248 = vmatprep.subr.mxu0 0.0
        %2249 = vmatpush2.msra.mxu0 0.0
        %2250 = vmatprep.subr.mxu0 0.0
        %2251 = vmatpush2.msra.mxu0 0.0
        %2252 = vmatprep.mubr.f32.mxu0 0.0
        %2253 = vmatmul.mubr.f32.gmra.mxu0 %v2186
        %v2254 = vpop.f32.mrf.mxu0
        %v2255 = vadd.f32 0.0, %v2254
        %v2256 = vpop.f32.mrf.mxu0
        %2257 = vdwg.mxu0
        %v2259 = vsel %vm1466, %v2036, 0
        %2261 = vmatprep.subr.mxu0 0.0
        %2262 = vmatpush1.msra.mxu0 0.0
        %2263 = vmatprep.subr.mxu0 0.0
        %2264 = vmatpush1.msra.mxu0 0.0
        %2265 = vmatprep.subr.mxu0 0.0
        %2266 = vmatpush1.msra.mxu0 0.0
        %2267 = vmatprep.subr.mxu0 0.0
        %2268 = vmatpush1.msra.mxu0 0.0
        %2269 = vmatprep.subr.mxu0 0.0
        %2270 = vmatpush1.msra.mxu0 0.0
        %2271 = vmatprep.subr.mxu0 0.0
        %2272 = vmatpush1.msra.mxu0 0.0
        %2273 = vmatprep.subr.mxu0 0.0
        %2274 = vmatpush1.msra.mxu0 0.0
        %2275 = vmatprep.subr.mxu0 0.0
        %2276 = vmatpush1.msra.mxu0 0.0
        %2277 = vmatprep.subr.mxu0 0.0
        %2278 = vmatpush1.msra.mxu0 0.0
        %2279 = vmatprep.subr.mxu0 0.0
        %2280 = vmatpush1.msra.mxu0 0.0
        %2281 = vmatprep.subr.mxu0 0.0
        %2282 = vmatpush1.msra.mxu0 0.0
        %2283 = vmatprep.subr.mxu0 0.0
        %2284 = vmatpush1.msra.mxu0 0.0
        %2285 = vmatprep.subr.mxu0 0.0
        %2286 = vmatpush1.msra.mxu0 0.0
        %2287 = vmatprep.subr.mxu0 0.0
        %2288 = vmatpush1.msra.mxu0 0.0
        %2289 = vmatprep.subr.mxu0 0.0
        %2290 = vmatpush1.msra.mxu0 %v1460
        %2291 = vmatprep.subr.mxu0 0.0
        %2292 = vmatpush1.msra.mxu0 %v1459
        %2293 = vmatprep.subr.mxu0 0.0
        %2294 = vmatpush2.msra.mxu0 0.0
        %2295 = vmatprep.subr.mxu0 0.0
        %2296 = vmatpush2.msra.mxu0 0.0
        %2297 = vmatprep.subr.mxu0 0.0
        %2298 = vmatpush2.msra.mxu0 0.0
        %2299 = vmatprep.subr.mxu0 0.0
        %2300 = vmatpush2.msra.mxu0 0.0
        %2301 = vmatprep.subr.mxu0 0.0
        %2302 = vmatpush2.msra.mxu0 0.0
        %2303 = vmatprep.subr.mxu0 0.0
        %2304 = vmatpush2.msra.mxu0 0.0
        %2305 = vmatprep.subr.mxu0 0.0
        %2306 = vmatpush2.msra.mxu0 0.0
        %2307 = vmatprep.subr.mxu0 0.0
        %2308 = vmatpush2.msra.mxu0 0.0
        %2309 = vmatprep.subr.mxu0 0.0
        %2310 = vmatpush2.msra.mxu0 0.0
        %2311 = vmatprep.subr.mxu0 0.0
        %2312 = vmatpush2.msra.mxu0 0.0
        %2313 = vmatprep.subr.mxu0 0.0
        %2314 = vmatpush2.msra.mxu0 0.0
        %2315 = vmatprep.subr.mxu0 0.0
        %2316 = vmatpush2.msra.mxu0 0.0
        %2317 = vmatprep.subr.mxu0 0.0
        %2318 = vmatpush2.msra.mxu0 0.0
        %2319 = vmatprep.subr.mxu0 0.0
        %2320 = vmatpush2.msra.mxu0 0.0
        %2321 = vmatprep.subr.mxu0 0.0
        %2322 = vmatpush2.msra.mxu0 0.0
        %2323 = vmatprep.subr.mxu0 0.0
        %2324 = vmatpush2.msra.mxu0 0.0
        %2325 = vmatprep.mubr.f32.mxu0 0.0
        %2326 = vmatmul.mubr.f32.gmra.mxu0 %v2259
        %v2327 = vpop.f32.mrf.mxu0
        %v2328 = vadd.f32 0.0, %v2327
        %v2329 = vpop.f32.mrf.mxu0
        %2330 = vdwg.mxu0
        %v2332 = vsel %vm1466, %v2109, 0
        %2334 = vmatprep.subr.mxu0 0.0
        %2335 = vmatpush1.msra.mxu0 0.0
        %2336 = vmatprep.subr.mxu0 0.0
        %2337 = vmatpush1.msra.mxu0 0.0
        %2338 = vmatprep.subr.mxu0 0.0
        %2339 = vmatpush1.msra.mxu0 0.0
        %2340 = vmatprep.subr.mxu0 0.0
        %2341 = vmatpush1.msra.mxu0 0.0
        %2342 = vmatprep.subr.mxu0 0.0
        %2343 = vmatpush1.msra.mxu0 0.0
        %2344 = vmatprep.subr.mxu0 0.0
        %2345 = vmatpush1.msra.mxu0 0.0
        %2346 = vmatprep.subr.mxu0 0.0
        %2347 = vmatpush1.msra.mxu0 0.0
        %2348 = vmatprep.subr.mxu0 0.0
        %2349 = vmatpush1.msra.mxu0 0.0
        %2350 = vmatprep.subr.mxu0 0.0
        %2351 = vmatpush1.msra.mxu0 0.0
        %2352 = vmatprep.subr.mxu0 0.0
        %2353 = vmatpush1.msra.mxu0 0.0
        %2354 = vmatprep.subr.mxu0 0.0
        %2355 = vmatpush1.msra.mxu0 0.0
        %2356 = vmatprep.subr.mxu0 0.0
        %2357 = vmatpush1.msra.mxu0 0.0
        %2358 = vmatprep.subr.mxu0 0.0
        %2359 = vmatpush1.msra.mxu0 0.0
        %2360 = vmatprep.subr.mxu0 0.0
        %2361 = vmatpush1.msra.mxu0 0.0
        %2362 = vmatprep.subr.mxu0 0.0
        %2363 = vmatpush1.msra.mxu0 %v1462
        %2364 = vmatprep.subr.mxu0 0.0
        %2365 = vmatpush1.msra.mxu0 %v1461
        %2366 = vmatprep.subr.mxu0 0.0
        %2367 = vmatpush2.msra.mxu0 0.0
        %2368 = vmatprep.subr.mxu0 0.0
        %2369 = vmatpush2.msra.mxu0 0.0
        %2370 = vmatprep.subr.mxu0 0.0
        %2371 = vmatpush2.msra.mxu0 0.0
        %2372 = vmatprep.subr.mxu0 0.0
        %2373 = vmatpush2.msra.mxu0 0.0
        %2374 = vmatprep.subr.mxu0 0.0
        %2375 = vmatpush2.msra.mxu0 0.0
        %2376 = vmatprep.subr.mxu0 0.0
        %2377 = vmatpush2.msra.mxu0 0.0
        %2378 = vmatprep.subr.mxu0 0.0
        %2379 = vmatpush2.msra.mxu0 0.0
        %2380 = vmatprep.subr.mxu0 0.0
        %2381 = vmatpush2.msra.mxu0 0.0
        %2382 = vmatprep.subr.mxu0 0.0
        %2383 = vmatpush2.msra.mxu0 0.0
        %2384 = vmatprep.subr.mxu0 0.0
        %2385 = vmatpush2.msra.mxu0 0.0
        %2386 = vmatprep.subr.mxu0 0.0
        %2387 = vmatpush2.msra.mxu0 0.0
        %2388 = vmatprep.subr.mxu0 0.0
        %2389 = vmatpush2.msra.mxu0 0.0
        %2390 = vmatprep.subr.mxu0 0.0
        %2391 = vmatpush2.msra.mxu0 0.0
        %2392 = vmatprep.subr.mxu0 0.0
        %2393 = vmatpush2.msra.mxu0 0.0
        %2394 = vmatprep.subr.mxu0 0.0
        %2395 = vmatpush2.msra.mxu0 0.0
        %2396 = vmatprep.subr.mxu0 0.0
        %2397 = vmatpush2.msra.mxu0 0.0
        %2398 = vmatprep.mubr.f32.mxu0 0.0
        %2399 = vmatmul.mubr.f32.gmra.mxu0 %v2332
        %v2400 = vpop.f32.mrf.mxu0
        %v2401 = vadd.f32 0.0, %v2400
        %v2402 = vpop.f32.mrf.mxu0
        %2403 = vdwg.mxu0
        %v2404 = vsel %vm517, %v2182, 0.0
        %v2405 = vsel %vm517, %v2255, 0.0
        %v2406 = vadd.f32 %v2404, %v2405
        %v2407 = vsel %vm517, %v2328, 0.0
        %v2408 = vadd.f32 %v2406, %v2407
        %v2409 = vsel %vm517, %v2401, 0.0
        %v2410 = vadd.f32 %v2408, %v2409
        %v2412 = vlaneseq
        %v2413 = vshrl.u32 %v2412, 7
        %v2414 = vsub.s32 0, %v2413
        %v2415 = vrot.slane %v1463, %v2414
        %v2417 = vadd.f32 %v2410, %v2415
        %v2418 = vadd.f32 %v2417, %v470
        %v2419 = vsel %vm517, %v2418, 0.0
        %2420 = vadd.xlane.f32.xlu0 %v2419
        %v2421 = vpop.xlane.xlu0 %2420
        %v2422 = vrcp.pop 32.0
        %v2423 = vmul.f32 %v2421, %v2422
        %v2424 = vsub.f32 %v2418, %v2423
        %v2425 = vmul.f32 %v2424, %v2424
        %v2426 = vsel %vm517, %v2425, 0.0
        %2427 = vadd.xlane.f32.xlu0 %v2426
        %v2428 = vpop.xlane.xlu0 %2427
        %v2429 = vmul.f32 %v2428, %v2422
        %v2430 = vadd.f32 %v2429, 1e-05
        %v2431 = vrsqrt.pop %v2430
        %v2432 = vmul.f32 %v2424, %v2431
        %v2434 = vlaneseq
        %v2435 = vshrl.u32 %v2434, 7
        %v2436 = vsub.s32 0, %v2435
        %v2437 = vrot.slane %v1464, %v2436
        %v2439 = vmul.f32 %v2432, %v2437
        %v2441 = vlaneseq
        %v2442 = vshrl.u32 %v2441, 7
        %v2443 = vsub.s32 0, %v2442
        %v2444 = vrot.slane %v1465, %v2443
        %v2446 = vadd.f32 %v2439, %v2444
        %2447 = vst.msk [vmem:[%s457] sm:$0xff] %vm517, %v2446
        %s2448 = sand.u32 %s323, 1
        %s2449 = scalar_lea.sflag [#allocation3], %s2448
        %s2450 = sand.u32 %s323, 1
        %s2451 = smul.addr %s2450, 8
        %s2452 = scalar_lea.vmem [#allocation2], %s2451
        // Predicated region
        $region73: #{tpu_custom_call.1} parent=71 // pred_check
          %p2453 = pneg %p333
        $region74: #{tpu_custom_call.1} parent=71 // pred_check_branch
          %2455 = sbr.rel (%p2453) target = $region76
        $region75: #{tpu_custom_call.1} parent=71 // pred_region
          %s2457 = ssub.s32 128, 128
          %2458 = vsyncadd %s2449, %s2457
          %s2459 = smul.addr %s27, 128
          %s2460 = scalar_lea.hbm %s13, %s2459
          %s2462 = sshll.u32 %s2452, 4
          %s2463 = int_to_ptr.vmem [resolvable:$true] %s2462
          %2465 = dma.vmem_to_hbm [thread:$0]  %s2463, 128, %s2460, %s2449
        $region76: #{tpu_custom_call.1} parent=71 // pred_fallthru
          _
      $region72: #{tpu_custom_call.1} parent=5 // pred_fallthru
        _
      %p2466 = scmp.le.s32.totalorder 2, %s22
      // Predicated region
      $region77: #{tpu_custom_call.1} parent=5 // pred_check
        %p2467 = pneg %p2466
      $region78: #{tpu_custom_call.1} parent=5 // pred_check_branch
        %2469 = sbr.rel (%p2467) target = $region80
      $region79: #{tpu_custom_call.1} parent=5 // pred_region
        %s2470 = ssub.s32 %s22, 2
        // Predicated region
        $region81: #{tpu_custom_call.1} parent=79 // pred_check
          %p2471 = pneg %p339
        $region82: #{tpu_custom_call.1} parent=79 // pred_check_branch
          %2473 = sbr.rel (%p2471) target = $region84
        $region83: #{tpu_custom_call.1} parent=79 // pred_region
          %s2474 = sand.u32 %s324, 1
          %s2475 = scalar_lea.sflag [#allocation3], %s2474
          %s2476 = sand.u32 %s324, 1
          %s2477 = smul.addr %s2476, 8
          %s2478 = scalar_lea.vmem [#allocation2], %s2477
          %2479 = dma.done %s2475, 128
        $region84: #{tpu_custom_call.1} parent=79 // pred_fallthru
          _
      $region80: #{tpu_custom_call.1} parent=5 // pred_fallthru
        _
    $region6: #{tpu_custom_call.1} parent=1 // loop_footer
      %s26 = sadd.s32 1, %s22
    $region7: #{tpu_custom_call.1} parent=1 // loop_footer_branch
      %21 = sbr.rel target = $region3
    $region8: #{tpu_custom_call.1} parent=1 // loop_exit
      _
    %2480 = vsyncpa [#allocation3], 1
    %s2481 = scalar_lea.sflag [#allocation3], 1
    %2482 = vsyncpa %s2481, 1

</llo_original>
